<compile_context>
chip_gen: v6e
topology: v6e:2x2x1
jax: 0.10.0
libtpu: 0.0.40
codegen_flags: <defaults>
</compile_context>

<pallas_src>
import functools
import math

import jax
import jax.numpy as jnp
from jax.experimental import pallas as pl
from jax.experimental.pallas import tpu as pltpu
from jax.scipy.special import erf as _jax_erf

LN_EPS = 1e-5                       # PyTorch nn.LayerNorm default
_INV_SQRT2 = 1.0 / math.sqrt(2.0)


def _layernorm(x, g, b):
    mu = jnp.mean(x, axis=-1, keepdims=True)
    xc = x - mu
    var = jnp.mean(xc * xc, axis=-1, keepdims=True)
    return xc * jax.lax.rsqrt(var + LN_EPS) * g + b


def _erf_poly(x):
    # Abramowitz & Stegun 7.1.26 (|err| < 1.5e-7): exp/abs/where/FMA only -> always lowers.
    sgn = jnp.where(x < 0.0, -1.0, 1.0)
    a = jnp.abs(x)
    t = 1.0 / (1.0 + 0.3275911 * a)
    poly = ((((1.061405429 * t - 1.453152027) * t + 1.421413741) * t
             - 0.284496736) * t + 0.254829592) * t
    return sgn * (1.0 - poly * jnp.exp(-a * a))


def _gelu_exact(x):
    return 0.5 * x * (1.0 + _erf_poly(x * _INV_SQRT2))


# ----------------------------------------------------------------------------
# Fused kernel: all layers + final LayerNorm for one token block (B_tile*N, D).
# ----------------------------------------------------------------------------
def _fused_layers_kernel(x_ref, ln1g_ref, ln1b_ref, wqkv_ref, wo_ref,
                         ln2g_ref, ln2b_ref, w1_ref, b1_ref, w2_ref, b2_ref,
                         fng_ref, fnb_ref, o_ref, x_acc,
                         *, b_tile, seq, heads, dim_head,
                         no_attn_feedthrough, fast_math):
    layer = pl.program_id(1)
    depth = pl.num_programs(1)
    m, d = x_acc.shape                            # m = b_tile * seq tokens
    inner = heads * dim_head
    mm_dtype = jnp.bfloat16 if fast_math else jnp.float32

    def mm(a):                                    # MXU operand cast (f32 accumulation)
        return a.astype(mm_dtype)

    @pl.when(layer == 0)
    def _():                                      # load activation into resident scratch
        x_acc[...] = x_ref[...].astype(jnp.float32)

    x = x_acc[...]                                # (m, d) f32

    # ---------------- Attention: LN -> fused qkv -> SDPA -> fused out proj ----------------
    h = _layernorm(x, ln1g_ref[...], ln1b_ref[...])
    qkv = jnp.dot(mm(h), mm(wqkv_ref[...]),
                  preferred_element_type=jnp.float32)            # (m, 3*inner), scale folded
    q = qkv[:, :inner].reshape(b_tile, seq, inner)               # lane layout: head-major
    k = qkv[:, inner:2 * inner].reshape(b_tile, seq, inner)
    v = qkv[:, 2 * inner:].reshape(b_tile, seq, inner)

    head_outs = []
    for hh in range(heads):                                      # static unrolled head loop
        lo, hi = hh * dim_head, (hh + 1) * dim_head
        # QK^T operands stay f32 (no re-cast of accumulated values).
        s = jnp.einsum("bqd,bkd->bqk", q[:, :, lo:hi], k[:, :, lo:hi],
                       preferred_element_type=jnp.float32)       # (b_tile, n, n)
        s = s - jnp.max(s, axis=-1, keepdims=True)
        p = jnp.exp(s)
        p = p * pl.reciprocal(jnp.sum(p, axis=-1, keepdims=True), approx=fast_math)
        head_outs.append(jnp.einsum("bqk,bkd->bqd", mm(p), mm(v[:, :, lo:hi]),
                                    preferred_element_type=jnp.float32))
    o = jnp.concatenate(head_outs, axis=-1).reshape(m, inner)    # (m, inner), head-major lanes
    attn = jnp.dot(mm(o), mm(wo_ref[...]),
                   preferred_element_type=jnp.float32)           # head-sum in MXU K dim
    x1 = attn if no_attn_feedthrough else attn + x

    # -------------- FeedForward: LN -> Linear -> GELU -> Linear + residual ----------------
    h2 = _layernorm(x1, ln2g_ref[...], ln2b_ref[...])
    h2 = jnp.dot(mm(h2), mm(w1_ref[...]),
                 preferred_element_type=jnp.float32) + b1_ref[...]
    h2 = _gelu_exact(h2)
    h2 = jnp.dot(mm(h2), mm(w2_ref[...]),
                 preferred_element_type=jnp.float32) + b2_ref[...]
    x_new = h2 + x1
    x_acc[...] = x_new

    # ---- final LayerNorm, written back to HBM once per token block ----
    @pl.when(layer == depth - 1)
    def _():
        o_ref[...] = _layernorm(x_new, fng_ref[...], fnb_ref[...]).astype(o_ref.dtype)


# ----------------------------------------------------------------------------
# Wrapper
# ----------------------------------------------------------------------------
_PER_LAYER = ("ln1_g", "ln1_b", "wqkv", "wo", "ln2_g", "ln2_b", "w1", "b1", "w2", "b2")


def _per_layer_spec(arr):
    assert arr.ndim == 3                        # (depth, ., .) -> depth dim squeezed
    return pl.BlockSpec((None,) + tuple(arr.shape[1:]), lambda b, l: (l, 0, 0))


def _choose_batch_tile(batch, seq, target_tokens=1024):
    """Largest divisor of `batch` with b_tile*seq <= target tokens; keep >=2 parallel steps
    when possible (v7x has 2 TensorCores)."""
    if seq % 8 != 0:
        return 1                                # keep the in-kernel (b, n, .) reshape layout-free
    best = 1
    for bt in range(1, batch + 1):
        if batch % bt == 0 and bt * seq <= target_tokens:
            best = bt
    if batch // best < 2 and best > 1:
        for bt in range(best - 1, 0, -1):
            if batch % bt == 0:
                best = bt
                break
    return best


def _vmem_capacity_bytes():
    try:
        cap = getattr(pltpu.get_tpu_info(), "vmem_capacity_bytes", None)
        if cap:
            return int(cap)
    except Exception:
        pass
    return 64 << 20                             # conservative: v7x per-TensorCore VMEM


def _vmem_limit_bytes(fp, m, n, d, x_itemsize):
    inner = fp["wo"].shape[1]
    mlp = fp["w1"].shape[2]
    b_tile = m // n
    per_layer_w = sum(math.prod(fp[k].shape[1:]) * fp[k].dtype.itemsize for k in _PER_LAYER)
    need = (2 * per_layer_w                     # double-buffered per-layer weight blocks
            + 2 * 2 * m * d * x_itemsize        # token in/out blocks (double-buffered)
            + m * d * 4                         # resident f32 activation scratch
            + m * 3 * inner * 4                 # qkv activations
            + 2 * b_tile * n * n * 4            # per-head score / prob tiles
            + m * mlp * 4                       # FFW hidden activations
            + 2 * d * 4                         # final-norm params
            + (2 << 20))                        # headroom for relayouts / spills
    cap = _vmem_capacity_bytes()
    return int(max(16 << 20, min(cap - (4 << 20), need)))


def _fused_transformer_call(x, fp, *, heads, dim_head, no_attn_feedthrough, fast_math):
    B, N, D = x.shape
    depth = fp["wqkv"].shape[0]
    b_tile = _choose_batch_tile(B, N)
    m = b_tile * N
    x_flat = x.reshape(B * N, D)                # lane-dense 2-D activation stream

    tok_spec = pl.BlockSpec((m, D), lambda b, l: (b, 0))
    fnorm_spec = pl.BlockSpec((1, D), lambda b, l: (0, 0))

    operands = [x_flat] + [fp[k] for k in _PER_LAYER] + [fp["norm_g"], fp["norm_b"]]
    in_specs = ([tok_spec] + [_per_layer_spec(fp[k]) for k in _PER_LAYER]
                + [fnorm_spec, fnorm_spec])

    kernel = functools.partial(_fused_layers_kernel,
                               b_tile=b_tile, seq=N, heads=int(heads),
                               dim_head=int(dim_head),
                               no_attn_feedthrough=no_attn_feedthrough,
                               fast_math=fast_math)
    out_flat = pl.pallas_call(
        kernel,
        out_shape=jax.ShapeDtypeStruct((B * N, D), x.dtype),
        grid=(B // b_tile, depth),              # depth innermost ("arbitrary")
        in_specs=in_specs,
        out_specs=tok_spec,
        scratch_shapes=[pltpu.VMEM((m, D), jnp.float32)],   # resident activation
        input_output_aliases={0: 0},            # safe: x read only at layer==0 of each block
        compiler_params=pltpu.CompilerParams(
            dimension_semantics=("parallel", "arbitrary"),
            vmem_limit_bytes=_vmem_limit_bytes(fp, m, N, D, x.dtype.itemsize)),
    )(*operands)
    return out_flat.reshape(B, N, D)


def transformer_forward(x, fused_params, *, heads, dim_head,
                        no_attn_feedthrough=True, fast_math=True):
    """Whole Transformer (all layers + final LayerNorm) in a single pallas_call."""
    return _fused_transformer_call(x, fused_params, heads=heads, dim_head=dim_head,
                                   no_attn_feedthrough=no_attn_feedthrough,
                                   fast_math=fast_math)


def prepare_fused_params(params, *, heads, dim_head, weights_dtype=jnp.bfloat16):
    """Stack per-layer params along depth; keep w_qkv fused (dim, 3*inner) with the attention
    scale folded into the Q columns; wo stays (inner, dim) so the head sum lands in the MXU
    K dimension.  bf16 weights (default) halve weight HBM traffic; biases / LN stay f32."""
    layers = params["layers"]
    inner = heads * dim_head
    scale = dim_head ** -0.5

    def stack(name):
        return jnp.stack([p[name] for p in layers])

    wqkv = stack("w_qkv")                                        # (depth, dim, 3*inner)
    wqkv = wqkv.at[:, :, :inner].multiply(scale)                 # fold attention scale into Q
    wd = weights_dtype
    return dict(
        ln1_g=stack("ln1_g"), ln1_b=stack("ln1_b"),              # (depth, 1, dim)
        wqkv=wqkv.astype(wd),                                    # (depth, dim, 3*inner)
        wo=stack("w_out").astype(wd),                            # (depth, inner, dim)
        ln2_g=stack("ln2_g"), ln2_b=stack("ln2_b"),
        w1=stack("w1").astype(wd), b1=stack("b1"),               # (depth, dim, mlp), (depth, 1, mlp)
        w2=stack("w2").astype(wd), b2=stack("b2"),
        norm_g=params["norm_g"], norm_b=params["norm_b"],        # (1, dim)
    )


def init_params(key, dim, depth, heads, dim_head, mlp_dim):
    inner = heads * dim_head
    layers = []
    for _ in range(depth):
        key, k0, k1, k2, k3, k4, k5 = jax.random.split(key, 7)
        layers.append(dict(
            ln1_g=jnp.ones((1, dim), jnp.float32),
            ln1_b=jnp.zeros((1, dim), jnp.float32),
            w_qkv=0.05 * jax.random.normal(k0, (dim, 3 * inner), jnp.float32),
            w_out=0.05 * jax.random.normal(k1, (inner, dim), jnp.float32),
            ln2_g=jnp.ones((1, dim), jnp.float32),
            ln2_b=jnp.zeros((1, dim), jnp.float32),
            w1=0.05 * jax.random.normal(k2, (dim, mlp_dim), jnp.float32),
            b1=0.01 * jax.random.normal(k3, (1, mlp_dim), jnp.float32),
            w2=0.05 * jax.random.normal(k4, (mlp_dim, dim), jnp.float32),
            b2=0.01 * jax.random.normal(k5, (1, dim), jnp.float32),
        ))
    return dict(layers=layers,
                norm_g=jnp.ones((1, dim), jnp.float32),
                norm_b=jnp.zeros((1, dim), jnp.float32))


def transformer_reference(x, params, *, heads, dim_head, no_attn_feedthrough=True):
    """Plain-JAX reference mirroring the PyTorch module (sanity check)."""
    def ln(t, g, b):
        mu = jnp.mean(t, -1, keepdims=True)
        var = jnp.mean((t - mu) ** 2, -1, keepdims=True)
        return (t - mu) * jax.lax.rsqrt(var + LN_EPS) * g + b

    B, N, D = x.shape
    inner = heads * dim_head
    scale = dim_head ** -0.5
    for p in params["layers"]:
        h = ln(x, p["ln1_g"], p["ln1_b"])
        q, k, v = jnp.split(h @ p["w_qkv"], 3, axis=-1)
        q = q.reshape(B, N, heads, dim_head).transpose(0, 2, 1, 3)
        k = k.reshape(B, N, heads, dim_head).transpose(0, 2, 1, 3)
        v = v.reshape(B, N, heads, dim_head).transpose(0, 2, 1, 3)
        a = jax.nn.softmax(jnp.einsum("bhqd,bhkd->bhqk", q, k) * scale, axis=-1)
        o = jnp.einsum("bhqk,bhkd->bhqd", a, v).transpose(0, 2, 1, 3).reshape(B, N, inner)
        attn = o @ p["w_out"]
        x = attn if no_attn_feedthrough else attn + x
        h2 = ln(x, p["ln2_g"], p["ln2_b"])
        h2 = h2 @ p["w1"] + p["b1"]
        h2 = 0.5 * h2 * (1.0 + _jax_erf(h2 * _INV_SQRT2))         # exact nn.GELU
        x = h2 @ p["w2"] + p["b2"] + x
    return ln(x, params["norm_g"], params["norm_b"])


if __name__ == "__main__":
    # Small config consistent with the module: dim=32, depth=2, heads=4, dim_head=8, mlp=64.
    B, N = 2, 8
    dim, depth, heads, dim_head, mlp_dim = 32, 2, 4, 8, 64

    key = jax.random.PRNGKey(0)
    key, xk = jax.random.split(key)
    x = jax.random.normal(xk, (B, N, dim), jnp.float32)
    params = init_params(key, dim, depth, heads, dim_head, mlp_dim)

    # Exact f32 path (numerical parity check against the plain-JAX reference).
    fused_f32 = prepare_fused_params(params, heads=heads, dim_head=dim_head,
                                     weights_dtype=jnp.float32)
    fwd_f32 = jax.jit(functools.partial(transformer_forward, heads=heads, dim_head=dim_head,
                                        no_attn_feedthrough=True, fast_math=False))
    out = jax.block_until_ready(fwd_f32(x, fused_f32))
    assert out.shape == (B, N, dim) and out.dtype == jnp.float32

    ref = transformer_reference(x, params, heads=heads, dim_head=dim_head,
                                no_attn_feedthrough=True)
    err = float(jnp.max(jnp.abs(out - ref)))
    assert err < 1e-1, f"f32 kernel vs reference mismatch: {err}"

    # Default fast path: bf16 MXU operands / bf16-stored weights, f32 accumulation.
    fused_bf16 = prepare_fused_params(params, heads=heads, dim_head=dim_head)
    fwd_fast = jax.jit(functools.partial(transformer_forward, heads=heads, dim_head=dim_head))
    out_fast = jax.block_until_ready(fwd_fast(x, fused_bf16))
    err_fast = float(jnp.max(jnp.abs(out_fast - out)))
    assert err_fast < 2.5e-1, f"bf16 fast path drift too large: {err_fast}"

    print("KERNEL_OK")
</pallas_src>

<mosaic_0001>
module attributes {stable_mosaic.version = 11 : i64} {
  func.func @_fused_layers_kernel(%arg0: i32, %arg1: i32, %arg2: memref<8x32xf32, #tpu.memory_space<vmem>>, %arg3: memref<1x1x32xf32, #tpu.memory_space<vmem>>, %arg4: memref<1x1x32xf32, #tpu.memory_space<vmem>>, %arg5: memref<1x32x96xf32, #tpu.memory_space<vmem>>, %arg6: memref<1x32x32xf32, #tpu.memory_space<vmem>>, %arg7: memref<1x1x32xf32, #tpu.memory_space<vmem>>, %arg8: memref<1x1x32xf32, #tpu.memory_space<vmem>>, %arg9: memref<1x32x64xf32, #tpu.memory_space<vmem>>, %arg10: memref<1x1x64xf32, #tpu.memory_space<vmem>>, %arg11: memref<1x64x32xf32, #tpu.memory_space<vmem>>, %arg12: memref<1x1x32xf32, #tpu.memory_space<vmem>>, %arg13: memref<1x32xf32, #tpu.memory_space<vmem>>, %arg14: memref<1x32xf32, #tpu.memory_space<vmem>>, %arg15: memref<8x32xf32, #tpu.memory_space<vmem>>, %arg16: memref<8x32xf32, #tpu.memory_space<vmem>>) attributes {dimension_semantics = [#tpu.dimension_semantics<parallel>, #tpu.dimension_semantics<arbitrary>], iteration_bounds = array<i64: 2, 2>, scalar_prefetch = 0 : i64, scratch_operands = 1 : i64, tpu.core_type = #tpu.core_type<tc>, window_params = [{transform_indices = @transform_0, window_bounds = array<i64: 8, 32>}, {transform_indices = @transform_1, window_bounds = array<i64: 1, 1, 32>}, {transform_indices = @transform_2, window_bounds = array<i64: 1, 1, 32>}, {transform_indices = @transform_3, window_bounds = array<i64: 1, 32, 96>}, {transform_indices = @transform_4, window_bounds = array<i64: 1, 32, 32>}, {transform_indices = @transform_5, window_bounds = array<i64: 1, 1, 32>}, {transform_indices = @transform_6, window_bounds = array<i64: 1, 1, 32>}, {transform_indices = @transform_7, window_bounds = array<i64: 1, 32, 64>}, {transform_indices = @transform_8, window_bounds = array<i64: 1, 1, 64>}, {transform_indices = @transform_9, window_bounds = array<i64: 1, 64, 32>}, {transform_indices = @transform_10, window_bounds = array<i64: 1, 1, 32>}, {pipeline_mode = #tpu.pipeline_mode<synchronous>, transform_indices = @transform_11, window_bounds = array<i64: 1, 32>}, {pipeline_mode = #tpu.pipeline_mode<synchronous>, transform_indices = @transform_12, window_bounds = array<i64: 1, 32>}, {transform_indices = @transform_13, window_bounds = array<i64: 8, 32>}]} {
    %c0_i32 = arith.constant 0 : i32
    %0 = arith.cmpi eq, %arg1, %c0_i32 : i32
    %1 = arith.extui %0 : i1 to i32
    %c0_i32_0 = arith.constant 0 : i32
    %2 = arith.cmpi ne, %1, %c0_i32_0 : i32
    scf.if %2 {
      %c0_80 = arith.constant 0 : index
      %c0_81 = arith.constant 0 : index
      %186 = vector.load %arg2[%c0_80, %c0_81] : memref<8x32xf32, #tpu.memory_space<vmem>>, vector<8x32xf32>
      %c0_82 = arith.constant 0 : index
      %c0_83 = arith.constant 0 : index
      %187 = vector.load %arg16[%c0_82, %c0_83] : memref<8x32xf32, #tpu.memory_space<vmem>>, vector<8x32xf32>
      tpu.vector_store %arg16[%c0_82, %c0_83], %186 {strides = array<i32>} : memref<8x32xf32, #tpu.memory_space<vmem>>, vector<8x32xf32>,
    } else {
    }
    %c0 = arith.constant 0 : index
    %c0_1 = arith.constant 0 : index
    %3 = vector.load %arg16[%c0, %c0_1] : memref<8x32xf32, #tpu.memory_space<vmem>>, vector<8x32xf32>
    %c0_2 = arith.constant 0 : index
    %c0_3 = arith.constant 0 : index
    %c0_4 = arith.constant 0 : index
    %4 = vector.load %arg3[%c0_2, %c0_3, %c0_4] : memref<1x1x32xf32, #tpu.memory_space<vmem>>, vector<1x1x32xf32>
    %5 = vector.shape_cast %4 : vector<1x1x32xf32> to vector<1x32xf32>
    %c0_5 = arith.constant 0 : index
    %c0_6 = arith.constant 0 : index
    %c0_7 = arith.constant 0 : index
    %6 = vector.load %arg4[%c0_5, %c0_6, %c0_7] : memref<1x1x32xf32, #tpu.memory_space<vmem>>, vector<1x1x32xf32>
    %7 = vector.shape_cast %6 : vector<1x1x32xf32> to vector<1x32xf32>
    %cst = arith.constant dense<0.000000e+00> : vector<8xf32>
    %8 = vector.multi_reduction <add>, %3, %cst [1] : vector<8x32xf32> to vector<8xf32>
    %9 = vector.shape_cast %8 : vector<8xf32> to vector<8x1xf32>
    %cst_8 = arith.constant 3.200000e+01 : f32
    %10 = vector.broadcast %cst_8 : f32 to vector<8x1xf32>
    %11 = arith.divf %9, %10 : vector<8x1xf32>
    %12 = vector.broadcast %11 : vector<8x1xf32> to vector<8x32xf32>
    %13 = arith.subf %3, %12 : vector<8x32xf32>
    %14 = arith.mulf %13, %13 : vector<8x32xf32>
    %cst_9 = arith.constant dense<0.000000e+00> : vector<8xf32>
    %15 = vector.multi_reduction <add>, %14, %cst_9 [1] : vector<8x32xf32> to vector<8xf32>
    %16 = vector.shape_cast %15 : vector<8xf32> to vector<8x1xf32>
    %cst_10 = arith.constant 3.200000e+01 : f32
    %17 = vector.broadcast %cst_10 : f32 to vector<8x1xf32>
    %18 = arith.divf %16, %17 : vector<8x1xf32>
    %cst_11 = arith.constant 9.99999974E-6 : f32
    %19 = vector.broadcast %cst_11 : f32 to vector<8x1xf32>
    %20 = arith.addf %18, %19 : vector<8x1xf32>
    %21 = math.rsqrt %20 : vector<8x1xf32>
    %22 = vector.broadcast %21 : vector<8x1xf32> to vector<8x32xf32>
    %23 = arith.mulf %13, %22 : vector<8x32xf32>
    %24 = vector.broadcast %5 : vector<1x32xf32> to vector<8x32xf32>
    %25 = arith.mulf %23, %24 : vector<8x32xf32>
    %26 = vector.broadcast %7 : vector<1x32xf32> to vector<8x32xf32>
    %27 = arith.addf %25, %26 : vector<8x32xf32>
    %c0_12 = arith.constant 0 : index
    %c0_13 = arith.constant 0 : index
    %c0_14 = arith.constant 0 : index
    %28 = vector.load %arg5[%c0_12, %c0_13, %c0_14] : memref<1x32x96xf32, #tpu.memory_space<vmem>>, vector<1x32x96xf32>
    %29 = vector.shape_cast %28 : vector<1x32x96xf32> to vector<32x96xf32>
    %cst_15 = arith.constant dense<0.000000e+00> : vector<8x96xf32>
    %30 = tpu.matmul %27, %29, %cst_15 {dimension_numbers = #tpu.dot_dimension_numbers<[1], [0], [0], [1], [0, 0, 1, 1], [], []>} : vector<8x32xf32>, vector<32x96xf32>, vector<8x96xf32> -> vector<8x96xf32>
    %31 = vector.extract_strided_slice %30 {offsets = [0, 0], sizes = [8, 32], strides = [1, 1]} : vector<8x96xf32> to vector<8x32xf32>
    %32 = vector.shape_cast %31 : vector<8x32xf32> to vector<1x8x32xf32>
    %33 = vector.extract_strided_slice %30 {offsets = [0, 32], sizes = [8, 32], strides = [1, 1]} : vector<8x96xf32> to vector<8x32xf32>
    %34 = vector.shape_cast %33 : vector<8x32xf32> to vector<1x8x32xf32>
    %35 = vector.extract_strided_slice %30 {offsets = [0, 64], sizes = [8, 32], strides = [1, 1]} : vector<8x96xf32> to vector<8x32xf32>
    %36 = vector.shape_cast %35 : vector<8x32xf32> to vector<1x8x32xf32>
    %37 = vector.extract_strided_slice %32 {offsets = [0, 0, 0], sizes = [1, 8, 8], strides = [1, 1, 1]} : vector<1x8x32xf32> to vector<1x8x8xf32>
    %38 = vector.extract_strided_slice %34 {offsets = [0, 0, 0], sizes = [1, 8, 8], strides = [1, 1, 1]} : vector<1x8x32xf32> to vector<1x8x8xf32>
    "tpu.trace_start"() <{level = 10 : i32, message = "bqd,bkd->bqk"}> : () -> ()
    %cst_16 = arith.constant dense<0.000000e+00> : vector<1x8x8xf32>
    %39 = tpu.matmul %37, %38, %cst_16 {dimension_numbers = #tpu.dot_dimension_numbers<[2], [2], [1], [1], [0, 0, 0, 1, 1, 1], [0], [0]>} : vector<1x8x8xf32>, vector<1x8x8xf32>, vector<1x8x8xf32> -> vector<1x8x8xf32>
    "tpu.trace_stop"() : () -> ()
    %cst_17 = arith.constant dense<0xFF800000> : vector<1x8xf32>
    %40 = vector.multi_reduction <maximumf>, %39, %cst_17 [2] : vector<1x8x8xf32> to vector<1x8xf32>
    %41 = vector.shape_cast %40 : vector<1x8xf32> to vector<1x8x1xf32>
    %42 = vector.broadcast %41 : vector<1x8x1xf32> to vector<1x8x8xf32>
    %43 = arith.subf %39, %42 : vector<1x8x8xf32>
    %44 = math.exp %43 : vector<1x8x8xf32>
    %cst_18 = arith.constant dense<0.000000e+00> : vector<1x8xf32>
    %45 = vector.multi_reduction <add>, %44, %cst_18 [2] : vector<1x8x8xf32> to vector<1x8xf32>
    %46 = vector.shape_cast %45 : vector<1x8xf32> to vector<1x8x1xf32>
    %47 = tpu.reciprocal %46 : vector<1x8x1xf32> -> vector<1x8x1xf32>
    %48 = vector.broadcast %47 : vector<1x8x1xf32> to vector<1x8x8xf32>
    %49 = arith.mulf %44, %48 : vector<1x8x8xf32>
    %50 = vector.extract_strided_slice %36 {offsets = [0, 0, 0], sizes = [1, 8, 8], strides = [1, 1, 1]} : vector<1x8x32xf32> to vector<1x8x8xf32>
    "tpu.trace_start"() <{level = 10 : i32, message = "bqk,bkd->bqd"}> : () -> ()
    %cst_19 = arith.constant dense<0.000000e+00> : vector<1x8x8xf32>
    %51 = tpu.matmul %49, %50, %cst_19 {dimension_numbers = #tpu.dot_dimension_numbers<[2], [1], [1], [2], [0, 0, 0, 1, 1, 2], [0], [0]>} : vector<1x8x8xf32>, vector<1x8x8xf32>, vector<1x8x8xf32> -> vector<1x8x8xf32>
    "tpu.trace_stop"() : () -> ()
    %52 = vector.extract_strided_slice %32 {offsets = [0, 0, 8], sizes = [1, 8, 8], strides = [1, 1, 1]} : vector<1x8x32xf32> to vector<1x8x8xf32>
    %53 = vector.extract_strided_slice %34 {offsets = [0, 0, 8], sizes = [1, 8, 8], strides = [1, 1, 1]} : vector<1x8x32xf32> to vector<1x8x8xf32>
    "tpu.trace_start"() <{level = 10 : i32, message = "bqd,bkd->bqk"}> : () -> ()
    %cst_20 = arith.constant dense<0.000000e+00> : vector<1x8x8xf32>
    %54 = tpu.matmul %52, %53, %cst_20 {dimension_numbers = #tpu.dot_dimension_numbers<[2], [2], [1], [1], [0, 0, 0, 1, 1, 1], [0], [0]>} : vector<1x8x8xf32>, vector<1x8x8xf32>, vector<1x8x8xf32> -> vector<1x8x8xf32>
    "tpu.trace_stop"() : () -> ()
    %cst_21 = arith.constant dense<0xFF800000> : vector<1x8xf32>
    %55 = vector.multi_reduction <maximumf>, %54, %cst_21 [2] : vector<1x8x8xf32> to vector<1x8xf32>
    %56 = vector.shape_cast %55 : vector<1x8xf32> to vector<1x8x1xf32>
    %57 = vector.broadcast %56 : vector<1x8x1xf32> to vector<1x8x8xf32>
    %58 = arith.subf %54, %57 : vector<1x8x8xf32>
    %59 = math.exp %58 : vector<1x8x8xf32>
    %cst_22 = arith.constant dense<0.000000e+00> : vector<1x8xf32>
    %60 = vector.multi_reduction <add>, %59, %cst_22 [2] : vector<1x8x8xf32> to vector<1x8xf32>
    %61 = vector.shape_cast %60 : vector<1x8xf32> to vector<1x8x1xf32>
    %62 = tpu.reciprocal %61 : vector<1x8x1xf32> -> vector<1x8x1xf32>
    %63 = vector.broadcast %62 : vector<1x8x1xf32> to vector<1x8x8xf32>
    %64 = arith.mulf %59, %63 : vector<1x8x8xf32>
    %65 = vector.extract_strided_slice %36 {offsets = [0, 0, 8], sizes = [1, 8, 8], strides = [1, 1, 1]} : vector<1x8x32xf32> to vector<1x8x8xf32>
    "tpu.trace_start"() <{level = 10 : i32, message = "bqk,bkd->bqd"}> : () -> ()
    %cst_23 = arith.constant dense<0.000000e+00> : vector<1x8x8xf32>
    %66 = tpu.matmul %64, %65, %cst_23 {dimension_numbers = #tpu.dot_dimension_numbers<[2], [1], [1], [2], [0, 0, 0, 1, 1, 2], [0], [0]>} : vector<1x8x8xf32>, vector<1x8x8xf32>, vector<1x8x8xf32> -> vector<1x8x8xf32>
    "tpu.trace_stop"() : () -> ()
    %67 = vector.extract_strided_slice %32 {offsets = [0, 0, 16], sizes = [1, 8, 8], strides = [1, 1, 1]} : vector<1x8x32xf32> to vector<1x8x8xf32>
    %68 = vector.extract_strided_slice %34 {offsets = [0, 0, 16], sizes = [1, 8, 8], strides = [1, 1, 1]} : vector<1x8x32xf32> to vector<1x8x8xf32>
    "tpu.trace_start"() <{level = 10 : i32, message = "bqd,bkd->bqk"}> : () -> ()
    %cst_24 = arith.constant dense<0.000000e+00> : vector<1x8x8xf32>
    %69 = tpu.matmul %67, %68, %cst_24 {dimension_numbers = #tpu.dot_dimension_numbers<[2], [2], [1], [1], [0, 0, 0, 1, 1, 1], [0], [0]>} : vector<1x8x8xf32>, vector<1x8x8xf32>, vector<1x8x8xf32> -> vector<1x8x8xf32>
    "tpu.trace_stop"() : () -> ()
    %cst_25 = arith.constant dense<0xFF800000> : vector<1x8xf32>
    %70 = vector.multi_reduction <maximumf>, %69, %cst_25 [2] : vector<1x8x8xf32> to vector<1x8xf32>
    %71 = vector.shape_cast %70 : vector<1x8xf32> to vector<1x8x1xf32>
    %72 = vector.broadcast %71 : vector<1x8x1xf32> to vector<1x8x8xf32>
    %73 = arith.subf %69, %72 : vector<1x8x8xf32>
    %74 = math.exp %73 : vector<1x8x8xf32>
    %cst_26 = arith.constant dense<0.000000e+00> : vector<1x8xf32>
    %75 = vector.multi_reduction <add>, %74, %cst_26 [2] : vector<1x8x8xf32> to vector<1x8xf32>
    %76 = vector.shape_cast %75 : vector<1x8xf32> to vector<1x8x1xf32>
    %77 = tpu.reciprocal %76 : vector<1x8x1xf32> -> vector<1x8x1xf32>
    %78 = vector.broadcast %77 : vector<1x8x1xf32> to vector<1x8x8xf32>
    %79 = arith.mulf %74, %78 : vector<1x8x8xf32>
    %80 = vector.extract_strided_slice %36 {offsets = [0, 0, 16], sizes = [1, 8, 8], strides = [1, 1, 1]} : vector<1x8x32xf32> to vector<1x8x8xf32>
    "tpu.trace_start"() <{level = 10 : i32, message = "bqk,bkd->bqd"}> : () -> ()
    %cst_27 = arith.constant dense<0.000000e+00> : vector<1x8x8xf32>
    %81 = tpu.matmul %79, %80, %cst_27 {dimension_numbers = #tpu.dot_dimension_numbers<[2], [1], [1], [2], [0, 0, 0, 1, 1, 2], [0], [0]>} : vector<1x8x8xf32>, vector<1x8x8xf32>, vector<1x8x8xf32> -> vector<1x8x8xf32>
    "tpu.trace_stop"() : () -> ()
    %82 = vector.extract_strided_slice %32 {offsets = [0, 0, 24], sizes = [1, 8, 8], strides = [1, 1, 1]} : vector<1x8x32xf32> to vector<1x8x8xf32>
    %83 = vector.extract_strided_slice %34 {offsets = [0, 0, 24], sizes = [1, 8, 8], strides = [1, 1, 1]} : vector<1x8x32xf32> to vector<1x8x8xf32>
    "tpu.trace_start"() <{level = 10 : i32, message = "bqd,bkd->bqk"}> : () -> ()
    %cst_28 = arith.constant dense<0.000000e+00> : vector<1x8x8xf32>
    %84 = tpu.matmul %82, %83, %cst_28 {dimension_numbers = #tpu.dot_dimension_numbers<[2], [2], [1], [1], [0, 0, 0, 1, 1, 1], [0], [0]>} : vector<1x8x8xf32>, vector<1x8x8xf32>, vector<1x8x8xf32> -> vector<1x8x8xf32>
    "tpu.trace_stop"() : () -> ()
    %cst_29 = arith.constant dense<0xFF800000> : vector<1x8xf32>
    %85 = vector.multi_reduction <maximumf>, %84, %cst_29 [2] : vector<1x8x8xf32> to vector<1x8xf32>
    %86 = vector.shape_cast %85 : vector<1x8xf32> to vector<1x8x1xf32>
    %87 = vector.broadcast %86 : vector<1x8x1xf32> to vector<1x8x8xf32>
    %88 = arith.subf %84, %87 : vector<1x8x8xf32>
    %89 = math.exp %88 : vector<1x8x8xf32>
    %cst_30 = arith.constant dense<0.000000e+00> : vector<1x8xf32>
    %90 = vector.multi_reduction <add>, %89, %cst_30 [2] : vector<1x8x8xf32> to vector<1x8xf32>
    %91 = vector.shape_cast %90 : vector<1x8xf32> to vector<1x8x1xf32>
    %92 = tpu.reciprocal %91 : vector<1x8x1xf32> -> vector<1x8x1xf32>
    %93 = vector.broadcast %92 : vector<1x8x1xf32> to vector<1x8x8xf32>
    %94 = arith.mulf %89, %93 : vector<1x8x8xf32>
    %95 = vector.extract_strided_slice %36 {offsets = [0, 0, 24], sizes = [1, 8, 8], strides = [1, 1, 1]} : vector<1x8x32xf32> to vector<1x8x8xf32>
    "tpu.trace_start"() <{level = 10 : i32, message = "bqk,bkd->bqd"}> : () -> ()
    %cst_31 = arith.constant dense<0.000000e+00> : vector<1x8x8xf32>
    %96 = tpu.matmul %94, %95, %cst_31 {dimension_numbers = #tpu.dot_dimension_numbers<[2], [1], [1], [2], [0, 0, 0, 1, 1, 2], [0], [0]>} : vector<1x8x8xf32>, vector<1x8x8xf32>, vector<1x8x8xf32> -> vector<1x8x8xf32>
    "tpu.trace_stop"() : () -> ()
    %97 = tpu.concatenate %51, %66, %81, %96 in 2 : vector<1x8x8xf32>, vector<1x8x8xf32>, vector<1x8x8xf32>, vector<1x8x8xf32> -> vector<1x8x32xf32>
    %98 = vector.shape_cast %97 : vector<1x8x32xf32> to vector<8x32xf32>
    %c0_32 = arith.constant 0 : index
    %c0_33 = arith.constant 0 : index
    %c0_34 = arith.constant 0 : index
    %99 = vector.load %arg6[%c0_32, %c0_33, %c0_34] : memref<1x32x32xf32, #tpu.memory_space<vmem>>, vector<1x32x32xf32>
    %100 = vector.shape_cast %99 : vector<1x32x32xf32> to vector<32x32xf32>
    %cst_35 = arith.constant dense<0.000000e+00> : vector<8x32xf32>
    %101 = tpu.matmul %98, %100, %cst_35 {dimension_numbers = #tpu.dot_dimension_numbers<[1], [0], [0], [1], [0, 0, 1, 1], [], []>} : vector<8x32xf32>, vector<32x32xf32>, vector<8x32xf32> -> vector<8x32xf32>
    %c0_36 = arith.constant 0 : index
    %c0_37 = arith.constant 0 : index
    %c0_38 = arith.constant 0 : index
    %102 = vector.load %arg7[%c0_36, %c0_37, %c0_38] : memref<1x1x32xf32, #tpu.memory_space<vmem>>, vector<1x1x32xf32>
    %103 = vector.shape_cast %102 : vector<1x1x32xf32> to vector<1x32xf32>
    %c0_39 = arith.constant 0 : index
    %c0_40 = arith.constant 0 : index
    %c0_41 = arith.constant 0 : index
    %104 = vector.load %arg8[%c0_39, %c0_40, %c0_41] : memref<1x1x32xf32, #tpu.memory_space<vmem>>, vector<1x1x32xf32>
    %105 = vector.shape_cast %104 : vector<1x1x32xf32> to vector<1x32xf32>
    %cst_42 = arith.constant dense<0.000000e+00> : vector<8xf32>
    %106 = vector.multi_reduction <add>, %101, %cst_42 [1] : vector<8x32xf32> to vector<8xf32>
    %107 = vector.shape_cast %106 : vector<8xf32> to vector<8x1xf32>
    %cst_43 = arith.constant 3.200000e+01 : f32
    %108 = vector.broadcast %cst_43 : f32 to vector<8x1xf32>
    %109 = arith.divf %107, %108 : vector<8x1xf32>
    %110 = vector.broadcast %109 : vector<8x1xf32> to vector<8x32xf32>
    %111 = arith.subf %101, %110 : vector<8x32xf32>
    %112 = arith.mulf %111, %111 : vector<8x32xf32>
    %cst_44 = arith.constant dense<0.000000e+00> : vector<8xf32>
    %113 = vector.multi_reduction <add>, %112, %cst_44 [1] : vector<8x32xf32> to vector<8xf32>
    %114 = vector.shape_cast %113 : vector<8xf32> to vector<8x1xf32>
    %cst_45 = arith.constant 3.200000e+01 : f32
    %115 = vector.broadcast %cst_45 : f32 to vector<8x1xf32>
    %116 = arith.divf %114, %115 : vector<8x1xf32>
    %cst_46 = arith.constant 9.99999974E-6 : f32
    %117 = vector.broadcast %cst_46 : f32 to vector<8x1xf32>
    %118 = arith.addf %116, %117 : vector<8x1xf32>
    %119 = math.rsqrt %118 : vector<8x1xf32>
    %120 = vector.broadcast %119 : vector<8x1xf32> to vector<8x32xf32>
    %121 = arith.mulf %111, %120 : vector<8x32xf32>
    %122 = vector.broadcast %103 : vector<1x32xf32> to vector<8x32xf32>
    %123 = arith.mulf %121, %122 : vector<8x32xf32>
    %124 = vector.broadcast %105 : vector<1x32xf32> to vector<8x32xf32>
    %125 = arith.addf %123, %124 : vector<8x32xf32>
    %c0_47 = arith.constant 0 : index
    %c0_48 = arith.constant 0 : index
    %c0_49 = arith.constant 0 : index
    %126 = vector.load %arg9[%c0_47, %c0_48, %c0_49] : memref<1x32x64xf32, #tpu.memory_space<vmem>>, vector<1x32x64xf32>
    %127 = vector.shape_cast %126 : vector<1x32x64xf32> to vector<32x64xf32>
    %cst_50 = arith.constant dense<0.000000e+00> : vector<8x64xf32>
    %128 = tpu.matmul %125, %127, %cst_50 {dimension_numbers = #tpu.dot_dimension_numbers<[1], [0], [0], [1], [0, 0, 1, 1], [], []>} : vector<8x32xf32>, vector<32x64xf32>, vector<8x64xf32> -> vector<8x64xf32>
    %c0_51 = arith.constant 0 : index
    %c0_52 = arith.constant 0 : index
    %c0_53 = arith.constant 0 : index
    %129 = vector.load %arg10[%c0_51, %c0_52, %c0_53] : memref<1x1x64xf32, #tpu.memory_space<vmem>>, vector<1x1x64xf32>
    %130 = vector.shape_cast %129 : vector<1x1x64xf32> to vector<1x64xf32>
    %131 = vector.broadcast %130 : vector<1x64xf32> to vector<8x64xf32>
    %132 = arith.addf %128, %131 : vector<8x64xf32>
    %cst_54 = arith.constant 5.000000e-01 : f32
    %133 = vector.broadcast %cst_54 : f32 to vector<8x64xf32>
    %134 = arith.mulf %133, %132 : vector<8x64xf32>
    %cst_55 = arith.constant 0.707106769 : f32
    %135 = vector.broadcast %cst_55 : f32 to vector<8x64xf32>
    %136 = arith.mulf %132, %135 : vector<8x64xf32>
    %cst_56 = arith.constant 0.000000e+00 : f32
    %137 = vector.broadcast %cst_56 : f32 to vector<8x64xf32>
    %138 = arith.cmpf olt, %136, %137 : vector<8x64xf32>
    %cst_57 = arith.constant -1.000000e+00 : f32
    %cst_58 = arith.constant 1.000000e+00 : f32
    %139 = vector.broadcast %cst_57 : f32 to vector<8x64xf32>
    %140 = vector.broadcast %cst_58 : f32 to vector<8x64xf32>
    %141 = arith.select %138, %139, %140 : vector<8x64xi1>, vector<8x64xf32>
    %142 = math.absf %136 : vector<8x64xf32>
    %cst_59 = arith.constant 0.327591091 : f32
    %143 = vector.broadcast %cst_59 : f32 to vector<8x64xf32>
    %144 = arith.mulf %143, %142 : vector<8x64xf32>
    %cst_60 = arith.constant 1.000000e+00 : f32
    %145 = vector.broadcast %cst_60 : f32 to vector<8x64xf32>
    %146 = arith.addf %145, %144 : vector<8x64xf32>
    %cst_61 = arith.constant 1.000000e+00 : f32
    %147 = vector.broadcast %cst_61 : f32 to vector<8x64xf32>
    %148 = arith.divf %147, %146 : vector<8x64xf32>
    %cst_62 = arith.constant 1.06140542 : f32
    %149 = vector.broadcast %cst_62 : f32 to vector<8x64xf32>
    %150 = arith.mulf %149, %148 : vector<8x64xf32>
    %cst_63 = arith.constant 1.45315206 : f32
    %151 = vector.broadcast %cst_63 : f32 to vector<8x64xf32>
    %152 = arith.subf %150, %151 : vector<8x64xf32>
    %153 = arith.mulf %152, %148 : vector<8x64xf32>
    %cst_64 = arith.constant 1.42141378 : f32
    %154 = vector.broadcast %cst_64 : f32 to vector<8x64xf32>
    %155 = arith.addf %153, %154 : vector<8x64xf32>
    %156 = arith.mulf %155, %148 : vector<8x64xf32>
    %cst_65 = arith.constant 0.284496725 : f32
    %157 = vector.broadcast %cst_65 : f32 to vector<8x64xf32>
    %158 = arith.subf %156, %157 : vector<8x64xf32>
    %159 = arith.mulf %158, %148 : vector<8x64xf32>
    %cst_66 = arith.constant 0.254829586 : f32
    %160 = vector.broadcast %cst_66 : f32 to vector<8x64xf32>
    %161 = arith.addf %159, %160 : vector<8x64xf32>
    %162 = arith.mulf %161, %148 : vector<8x64xf32>
    %cst_67 = arith.constant 0.000000e+00 : f32
    %163 = vector.broadcast %cst_67 : f32 to vector<8x64xf32>
    %164 = arith.subf %163, %142 : vector<8x64xf32>
    %165 = arith.mulf %164, %142 : vector<8x64xf32>
    %166 = math.exp %165 : vector<8x64xf32>
    %167 = arith.mulf %162, %166 : vector<8x64xf32>
    %cst_68 = arith.constant 1.000000e+00 : f32
    %168 = vector.broadcast %cst_68 : f32 to vector<8x64xf32>
    %169 = arith.subf %168, %167 : vector<8x64xf32>
    %170 = arith.mulf %141, %169 : vector<8x64xf32>
    %cst_69 = arith.constant 1.000000e+00 : f32
    %171 = vector.broadcast %cst_69 : f32 to vector<8x64xf32>
    %172 = arith.addf %171, %170 : vector<8x64xf32>
    %173 = arith.mulf %134, %172 : vector<8x64xf32>
    %c0_70 = arith.constant 0 : index
    %c0_71 = arith.constant 0 : index
    %c0_72 = arith.constant 0 : index
    %174 = vector.load %arg11[%c0_70, %c0_71, %c0_72] : memref<1x64x32xf32, #tpu.memory_space<vmem>>, vector<1x64x32xf32>
    %175 = vector.shape_cast %174 : vector<1x64x32xf32> to vector<64x32xf32>
    %cst_73 = arith.constant dense<0.000000e+00> : vector<8x32xf32>
    %176 = tpu.matmul %173, %175, %cst_73 {dimension_numbers = #tpu.dot_dimension_numbers<[1], [0], [0], [1], [0, 0, 1, 1], [], []>} : vector<8x64xf32>, vector<64x32xf32>, vector<8x32xf32> -> vector<8x32xf32>
    %c0_74 = arith.constant 0 : index
    %c0_75 = arith.constant 0 : index
    %c0_76 = arith.constant 0 : index
    %177 = vector.load %arg12[%c0_74, %c0_75, %c0_76] : memref<1x1x32xf32, #tpu.memory_space<vmem>>, vector<1x1x32xf32>
    %178 = vector.shape_cast %177 : vector<1x1x32xf32> to vector<1x32xf32>
    %179 = vector.broadcast %178 : vector<1x32xf32> to vector<8x32xf32>
    %180 = arith.addf %176, %179 : vector<8x32xf32>
    %181 = arith.addf %180, %101 : vector<8x32xf32>
    %c0_77 = arith.constant 0 : index
    %c0_78 = arith.constant 0 : index
    %182 = vector.load %arg16[%c0_77, %c0_78] : memref<8x32xf32, #tpu.memory_space<vmem>>, vector<8x32xf32>
    tpu.vector_store %arg16[%c0_77, %c0_78], %181 {strides = array<i32>} : memref<8x32xf32, #tpu.memory_space<vmem>>, vector<8x32xf32>,
    %c1_i32 = arith.constant 1 : i32
    %183 = arith.cmpi eq, %arg1, %c1_i32 : i32
    %184 = arith.extui %183 : i1 to i32
    %c0_i32_79 = arith.constant 0 : i32
    %185 = arith.cmpi ne, %184, %c0_i32_79 : i32
    scf.if %185 {
      %c0_80 = arith.constant 0 : index
      %c0_81 = arith.constant 0 : index
      %186 = vector.load %arg13[%c0_80, %c0_81] : memref<1x32xf32, #tpu.memory_space<vmem>>, vector<1x32xf32>
      %c0_82 = arith.constant 0 : index
      %c0_83 = arith.constant 0 : index
      %187 = vector.load %arg14[%c0_82, %c0_83] : memref<1x32xf32, #tpu.memory_space<vmem>>, vector<1x32xf32>
      %cst_84 = arith.constant dense<0.000000e+00> : vector<8xf32>
      %188 = vector.multi_reduction <add>, %181, %cst_84 [1] : vector<8x32xf32> to vector<8xf32>
      %189 = vector.shape_cast %188 : vector<8xf32> to vector<8x1xf32>
      %cst_85 = arith.constant 3.200000e+01 : f32
      %190 = vector.broadcast %cst_85 : f32 to vector<8x1xf32>
      %191 = arith.divf %189, %190 : vector<8x1xf32>
      %192 = vector.broadcast %191 : vector<8x1xf32> to vector<8x32xf32>
      %193 = arith.subf %181, %192 : vector<8x32xf32>
      %194 = arith.mulf %193, %193 : vector<8x32xf32>
      %cst_86 = arith.constant dense<0.000000e+00> : vector<8xf32>
      %195 = vector.multi_reduction <add>, %194, %cst_86 [1] : vector<8x32xf32> to vector<8xf32>
      %196 = vector.shape_cast %195 : vector<8xf32> to vector<8x1xf32>
      %cst_87 = arith.constant 3.200000e+01 : f32
      %197 = vector.broadcast %cst_87 : f32 to vector<8x1xf32>
      %198 = arith.divf %196, %197 : vector<8x1xf32>
      %cst_88 = arith.constant 9.99999974E-6 : f32
      %199 = vector.broadcast %cst_88 : f32 to vector<8x1xf32>
      %200 = arith.addf %198, %199 : vector<8x1xf32>
      %201 = math.rsqrt %200 : vector<8x1xf32>
      %202 = vector.broadcast %201 : vector<8x1xf32> to vector<8x32xf32>
      %203 = arith.mulf %193, %202 : vector<8x32xf32>
      %204 = vector.broadcast %186 : vector<1x32xf32> to vector<8x32xf32>
      %205 = arith.mulf %203, %204 : vector<8x32xf32>
      %206 = vector.broadcast %187 : vector<1x32xf32> to vector<8x32xf32>
      %207 = arith.addf %205, %206 : vector<8x32xf32>
      %c0_89 = arith.constant 0 : index
      %c0_90 = arith.constant 0 : index
      %208 = vector.load %arg15[%c0_89, %c0_90] : memref<8x32xf32, #tpu.memory_space<vmem>>, vector<8x32xf32>
      tpu.vector_store %arg15[%c0_89, %c0_90], %207 {strides = array<i32>} : memref<8x32xf32, #tpu.memory_space<vmem>>, vector<8x32xf32>,
    } else {
    }
    return
  }
  func.func @transform_0(%arg0: i32, %arg1: i32) -> (i32, i32) {
    %c0_i32 = arith.constant 0 : i32
    %c0_i32_0 = arith.constant 0 : i32
    return %arg0, %c0_i32 : i32, i32
  }
  func.func @transform_1(%arg0: i32, %arg1: i32) -> (i32, i32, i32) {
    %c0_i32 = arith.constant 0 : i32
    %c0_i32_0 = arith.constant 0 : i32
    %c0_i32_1 = arith.constant 0 : i32
    return %arg1, %c0_i32, %c0_i32_0 : i32, i32, i32
  }
  func.func @transform_2(%arg0: i32, %arg1: i32) -> (i32, i32, i32) {
    %c0_i32 = arith.constant 0 : i32
    %c0_i32_0 = arith.constant 0 : i32
    %c0_i32_1 = arith.constant 0 : i32
    return %arg1, %c0_i32, %c0_i32_0 : i32, i32, i32
  }
  func.func @transform_3(%arg0: i32, %arg1: i32) -> (i32, i32, i32) {
    %c0_i32 = arith.constant 0 : i32
    %c0_i32_0 = arith.constant 0 : i32
    %c0_i32_1 = arith.constant 0 : i32
    return %arg1, %c0_i32, %c0_i32_0 : i32, i32, i32
  }
  func.func @transform_4(%arg0: i32, %arg1: i32) -> (i32, i32, i32) {
    %c0_i32 = arith.constant 0 : i32
    %c0_i32_0 = arith.constant 0 : i32
    %c0_i32_1 = arith.constant 0 : i32
    return %arg1, %c0_i32, %c0_i32_0 : i32, i32, i32
  }
  func.func @transform_5(%arg0: i32, %arg1: i32) -> (i32, i32, i32) {
    %c0_i32 = arith.constant 0 : i32
    %c0_i32_0 = arith.constant 0 : i32
    %c0_i32_1 = arith.constant 0 : i32
    return %arg1, %c0_i32, %c0_i32_0 : i32, i32, i32
  }
  func.func @transform_6(%arg0: i32, %arg1: i32) -> (i32, i32, i32) {
    %c0_i32 = arith.constant 0 : i32
    %c0_i32_0 = arith.constant 0 : i32
    %c0_i32_1 = arith.constant 0 : i32
    return %arg1, %c0_i32, %c0_i32_0 : i32, i32, i32
  }
  func.func @transform_7(%arg0: i32, %arg1: i32) -> (i32, i32, i32) {
    %c0_i32 = arith.constant 0 : i32
    %c0_i32_0 = arith.constant 0 : i32
    %c0_i32_1 = arith.constant 0 : i32
    return %arg1, %c0_i32, %c0_i32_0 : i32, i32, i32
  }
  func.func @transform_8(%arg0: i32, %arg1: i32) -> (i32, i32, i32) {
    %c0_i32 = arith.constant 0 : i32
    %c0_i32_0 = arith.constant 0 : i32
    %c0_i32_1 = arith.constant 0 : i32
    return %arg1, %c0_i32, %c0_i32_0 : i32, i32, i32
  }
  func.func @transform_9(%arg0: i32, %arg1: i32) -> (i32, i32, i32) {
    %c0_i32 = arith.constant 0 : i32
    %c0_i32_0 = arith.constant 0 : i32
    %c0_i32_1 = arith.constant 0 : i32
    return %arg1, %c0_i32, %c0_i32_0 : i32, i32, i32
  }
  func.func @transform_10(%arg0: i32, %arg1: i32) -> (i32, i32, i32) {
    %c0_i32 = arith.constant 0 : i32
    %c0_i32_0 = arith.constant 0 : i32
    %c0_i32_1 = arith.constant 0 : i32
    return %arg1, %c0_i32, %c0_i32_0 : i32, i32, i32
  }
  func.func @transform_11(%arg0: i32, %arg1: i32) -> (i32, i32) {
    %c0_i32 = arith.constant 0 : i32
    %c0_i32_0 = arith.constant 0 : i32
    %c0_i32_1 = arith.constant 0 : i32
    return %c0_i32, %c0_i32_0 : i32, i32
  }
  func.func @transform_12(%arg0: i32, %arg1: i32) -> (i32, i32) {
    %c0_i32 = arith.constant 0 : i32
    %c0_i32_0 = arith.constant 0 : i32
    %c0_i32_1 = arith.constant 0 : i32
    return %c0_i32, %c0_i32_0 : i32, i32
  }
  func.func @transform_13(%arg0: i32, %arg1: i32) -> (i32, i32) {
    %c0_i32 = arith.constant 0 : i32
    %c0_i32_0 = arith.constant 0 : i32
    return %arg0, %c0_i32 : i32, i32
  }
}

</mosaic_0001>

<llo_original>
// kernel: transformer_forward.1
$region0: #{transformer_forward.1}
  #allocation0 [shape = 'u32[]', space=smem, size = 0x4, offset = 0x4, fixed_abs, tag = 'smem constant byte address 0x4 - core index']
  #allocation1 [shape = 'u32[144,128]{1,0:T(1,128)}', space=vmem, size = 0x12000, scoped, tag = 'internal scratch']
  #allocation2 [shape = 'f32[8,32]{1,0:T(8,128)}', space=vmem, size = 0x1000, scoped, tag = 'scratch operand']
  %s0 = inlined_call_operand.vmem [shape: f32[16,32], index: 0, kind: input, shape index: {}, may-alias: {0,13}]
  %s1 = inlined_call_operand.vmem [shape: f32[2,1,32], index: 1, kind: input, shape index: {}]
  %s2 = inlined_call_operand.vmem [shape: f32[2,1,32], index: 2, kind: input, shape index: {}]
  %s3 = inlined_call_operand.vmem [shape: f32[2,32,96], index: 3, kind: input, shape index: {}]
  %s4 = inlined_call_operand.vmem [shape: f32[2,32,32], index: 4, kind: input, shape index: {}]
  %s5 = inlined_call_operand.vmem [shape: f32[2,1,32], index: 5, kind: input, shape index: {}]
  %s6 = inlined_call_operand.vmem [shape: f32[2,1,32], index: 6, kind: input, shape index: {}]
  %s7 = inlined_call_operand.vmem [shape: f32[2,32,64], index: 7, kind: input, shape index: {}]
  %s8 = inlined_call_operand.vmem [shape: f32[2,1,64], index: 8, kind: input, shape index: {}]
  %s9 = inlined_call_operand.vmem [shape: f32[2,64,32], index: 9, kind: input, shape index: {}]
  %s10 = inlined_call_operand.vmem [shape: f32[2,1,32], index: 10, kind: input, shape index: {}]
  %s11 = inlined_call_operand.vmem [shape: f32[1,32], index: 11, kind: input, shape index: {}]
  %s12 = inlined_call_operand.vmem [shape: f32[1,32], index: 12, kind: input, shape index: {}]
  %s13 = inlined_call_operand.vmem [shape: f32[16,32], index: 13, kind: output, shape index: {}, may-alias: {0,13}]
  %s14 = sld [smem:[#allocation0]]
  $region93: #{transformer_forward.1} parent=0
    _
  %s16 = ssub.s32 1, %s14
  %s17 = scalar_select 0, %s16, %s14
  loop: start=0, step=1, limit=6
  $region2: #{transformer_forward.1} parent=0 // loop_pre_header
    _
  $region3: #{transformer_forward.1} parent=0 // loop_header
    %s19 = sphi 0, %s23
    %p20 = scmp.ge.s32.totalorder %s19, 6
    %s26 = sphi 0, %s38
    %s27 = sphi 0, %s34
    %s28 = sphi 0, %s26
    %s29 = sphi 0, %s27
    %s30 = sphi 0, %s28
    %s31 = sphi 0, %s29
    %s41 = sphi 0, %s43
    %s44 = sphi 0, %s41
    %s45 = sphi 0, %s44
    %s61 = sphi 0, %s45
    %s67 = sphi 0, %s69
    %s70 = sphi 0, %s67
    %s71 = sphi 0, %s70
    %s87 = sphi 0, %s71
    %s93 = sphi 0, %s95
    %s96 = sphi 0, %s93
    %s97 = sphi 0, %s96
    %s113 = sphi 0, %s97
    %s119 = sphi 0, %s121
    %s122 = sphi 0, %s119
    %s123 = sphi 0, %s122
    %s139 = sphi 0, %s123
    %s145 = sphi 0, %s147
    %s148 = sphi 0, %s145
    %s149 = sphi 0, %s148
    %s165 = sphi 0, %s149
    %s171 = sphi 0, %s173
    %s174 = sphi 0, %s171
    %s175 = sphi 0, %s174
    %s191 = sphi 0, %s175
    %s197 = sphi 0, %s199
    %s200 = sphi 0, %s197
    %s201 = sphi 0, %s200
    %s217 = sphi 0, %s201
    %s223 = sphi 0, %s225
    %s226 = sphi 0, %s223
    %s227 = sphi 0, %s226
    %s243 = sphi 0, %s227
    %s249 = sphi 0, %s251
    %s252 = sphi 0, %s249
    %s253 = sphi 0, %s252
    %s269 = sphi 0, %s253
    %s275 = sphi 0, %s277
    %s278 = sphi 0, %s275
    %s279 = sphi 0, %s278
    %s295 = sphi 0, %s279
    %s301 = sphi 0, %s303
    %s304 = sphi 0, %s301
    %s305 = sphi 0, %s304
    %s321 = sphi 0, %s305
    %s325 = sphi 0, %s325
    %s327 = sphi 0, %s325
    %s328 = sphi 0, %s327
    %s342 = sphi 0, %s328
    %s346 = sphi 0, %s346
    %s348 = sphi 0, %s346
    %s349 = sphi 0, %s348
    %s363 = sphi 0, %s349
    %s369 = sphi 0, %s371
    %s372 = sphi 0, %s369
    %s373 = sphi 0, %s372
    %s389 = sphi 0, %s373
  $region4: #{transformer_forward.1} parent=0 // loop_header_branch
    %22 = sbr.rel (%p20) target = $region8
  $region5: #{transformer_forward.1} parent=0 // loop_body
    %s24 = ssub.s32 %s19, 1
    %s25 = ssub.s32 %s19, 2
    %s32 = sadd.s32 1, %s27
    %p33 = scmp.ge.s32.totalorder %s32, 2
    %s34 = scalar_select %p33, 0, %s32
    %s35 = sadd.s32 1, %s26
    %s36 = scalar_select %p33, %s35, %s26
    %p37 = scmp.ge.s32.totalorder %s36, 2
    %s38 = scalar_select %p37, 0, %s36
    %s39 = ssub.s32 %s26, %s38
    %p40 = scmp.eq.s32.totalorder %s39, 0
    %s42 = sadd.s32 %s41, 1
    %s43 = scalar_select %p40, %s41, %s42
    %p46 = pneg %p40
    %p47 = scmp.eq.s32.totalorder %s19, 3
    %p48 = por %p46, %p47
    %p49 = scmp.ne.s32.totalorder %s41, %s44
    %p50 = scmp.eq.s32.totalorder %s19, 0
    %p51 = por %p49, %p50
    %p52 = scmp.ne.s32.totalorder %s41, %s44
    %p53 = scmp.eq.s32.totalorder %s24, 3
    %p54 = por %p52, %p53
    %p55 = scmp.ne.s32.totalorder %s44, %s45
    %p56 = scmp.eq.s32.totalorder %s24, 0
    %p57 = por %p55, %p56
    %p58 = scmp.ne.s32.totalorder %s44, %s45
    %p59 = scmp.eq.s32.totalorder %s25, 3
    %p60 = por %p58, %p59
    %p62 = scmp.ne.s32.totalorder %s45, %s61
    %p63 = scmp.eq.s32.totalorder %s25, 0
    %p64 = por %p62, %p63
    %s65 = ssub.s32 %s27, %s34
    %p66 = scmp.eq.s32.totalorder %s65, 0
    %s68 = sadd.s32 %s67, 1
    %s69 = scalar_select %p66, %s67, %s68
    %p72 = pneg %p66
    %p73 = scmp.eq.s32.totalorder %s19, 3
    %p74 = por %p72, %p73
    %p75 = scmp.ne.s32.totalorder %s67, %s70
    %p76 = scmp.eq.s32.totalorder %s19, 0
    %p77 = por %p75, %p76
    %p78 = scmp.ne.s32.totalorder %s67, %s70
    %p79 = scmp.eq.s32.totalorder %s24, 3
    %p80 = por %p78, %p79
    %p81 = scmp.ne.s32.totalorder %s70, %s71
    %p82 = scmp.eq.s32.totalorder %s24, 0
    %p83 = por %p81, %p82
    %p84 = scmp.ne.s32.totalorder %s70, %s71
    %p85 = scmp.eq.s32.totalorder %s25, 3
    %p86 = por %p84, %p85
    %p88 = scmp.ne.s32.totalorder %s71, %s87
    %p89 = scmp.eq.s32.totalorder %s25, 0
    %p90 = por %p88, %p89
    %s91 = ssub.s32 %s27, %s34
    %p92 = scmp.eq.s32.totalorder %s91, 0
    %s94 = sadd.s32 %s93, 1
    %s95 = scalar_select %p92, %s93, %s94
    %p98 = pneg %p92
    %p99 = scmp.eq.s32.totalorder %s19, 3
    %p100 = por %p98, %p99
    %p101 = scmp.ne.s32.totalorder %s93, %s96
    %p102 = scmp.eq.s32.totalorder %s19, 0
    %p103 = por %p101, %p102
    %p104 = scmp.ne.s32.totalorder %s93, %s96
    %p105 = scmp.eq.s32.totalorder %s24, 3
    %p106 = por %p104, %p105
    %p107 = scmp.ne.s32.totalorder %s96, %s97
    %p108 = scmp.eq.s32.totalorder %s24, 0
    %p109 = por %p107, %p108
    %p110 = scmp.ne.s32.totalorder %s96, %s97
    %p111 = scmp.eq.s32.totalorder %s25, 3
    %p112 = por %p110, %p111
    %p114 = scmp.ne.s32.totalorder %s97, %s113
    %p115 = scmp.eq.s32.totalorder %s25, 0
    %p116 = por %p114, %p115
    %s117 = ssub.s32 %s27, %s34
    %p118 = scmp.eq.s32.totalorder %s117, 0
    %s120 = sadd.s32 %s119, 1
    %s121 = scalar_select %p118, %s119, %s120
    %p124 = pneg %p118
    %p125 = scmp.eq.s32.totalorder %s19, 3
    %p126 = por %p124, %p125
    %p127 = scmp.ne.s32.totalorder %s119, %s122
    %p128 = scmp.eq.s32.totalorder %s19, 0
    %p129 = por %p127, %p128
    %p130 = scmp.ne.s32.totalorder %s119, %s122
    %p131 = scmp.eq.s32.totalorder %s24, 3
    %p132 = por %p130, %p131
    %p133 = scmp.ne.s32.totalorder %s122, %s123
    %p134 = scmp.eq.s32.totalorder %s24, 0
    %p135 = por %p133, %p134
    %p136 = scmp.ne.s32.totalorder %s122, %s123
    %p137 = scmp.eq.s32.totalorder %s25, 3
    %p138 = por %p136, %p137
    %p140 = scmp.ne.s32.totalorder %s123, %s139
    %p141 = scmp.eq.s32.totalorder %s25, 0
    %p142 = por %p140, %p141
    %s143 = ssub.s32 %s27, %s34
    %p144 = scmp.eq.s32.totalorder %s143, 0
    %s146 = sadd.s32 %s145, 1
    %s147 = scalar_select %p144, %s145, %s146
    %p150 = pneg %p144
    %p151 = scmp.eq.s32.totalorder %s19, 3
    %p152 = por %p150, %p151
    %p153 = scmp.ne.s32.totalorder %s145, %s148
    %p154 = scmp.eq.s32.totalorder %s19, 0
    %p155 = por %p153, %p154
    %p156 = scmp.ne.s32.totalorder %s145, %s148
    %p157 = scmp.eq.s32.totalorder %s24, 3
    %p158 = por %p156, %p157
    %p159 = scmp.ne.s32.totalorder %s148, %s149
    %p160 = scmp.eq.s32.totalorder %s24, 0
    %p161 = por %p159, %p160
    %p162 = scmp.ne.s32.totalorder %s148, %s149
    %p163 = scmp.eq.s32.totalorder %s25, 3
    %p164 = por %p162, %p163
    %p166 = scmp.ne.s32.totalorder %s149, %s165
    %p167 = scmp.eq.s32.totalorder %s25, 0
    %p168 = por %p166, %p167
    %s169 = ssub.s32 %s27, %s34
    %p170 = scmp.eq.s32.totalorder %s169, 0
    %s172 = sadd.s32 %s171, 1
    %s173 = scalar_select %p170, %s171, %s172
    %p176 = pneg %p170
    %p177 = scmp.eq.s32.totalorder %s19, 3
    %p178 = por %p176, %p177
    %p179 = scmp.ne.s32.totalorder %s171, %s174
    %p180 = scmp.eq.s32.totalorder %s19, 0
    %p181 = por %p179, %p180
    %p182 = scmp.ne.s32.totalorder %s171, %s174
    %p183 = scmp.eq.s32.totalorder %s24, 3
    %p184 = por %p182, %p183
    %p185 = scmp.ne.s32.totalorder %s174, %s175
    %p186 = scmp.eq.s32.totalorder %s24, 0
    %p187 = por %p185, %p186
    %p188 = scmp.ne.s32.totalorder %s174, %s175
    %p189 = scmp.eq.s32.totalorder %s25, 3
    %p190 = por %p188, %p189
    %p192 = scmp.ne.s32.totalorder %s175, %s191
    %p193 = scmp.eq.s32.totalorder %s25, 0
    %p194 = por %p192, %p193
    %s195 = ssub.s32 %s27, %s34
    %p196 = scmp.eq.s32.totalorder %s195, 0
    %s198 = sadd.s32 %s197, 1
    %s199 = scalar_select %p196, %s197, %s198
    %p202 = pneg %p196
    %p203 = scmp.eq.s32.totalorder %s19, 3
    %p204 = por %p202, %p203
    %p205 = scmp.ne.s32.totalorder %s197, %s200
    %p206 = scmp.eq.s32.totalorder %s19, 0
    %p207 = por %p205, %p206
    %p208 = scmp.ne.s32.totalorder %s197, %s200
    %p209 = scmp.eq.s32.totalorder %s24, 3
    %p210 = por %p208, %p209
    %p211 = scmp.ne.s32.totalorder %s200, %s201
    %p212 = scmp.eq.s32.totalorder %s24, 0
    %p213 = por %p211, %p212
    %p214 = scmp.ne.s32.totalorder %s200, %s201
    %p215 = scmp.eq.s32.totalorder %s25, 3
    %p216 = por %p214, %p215
    %p218 = scmp.ne.s32.totalorder %s201, %s217
    %p219 = scmp.eq.s32.totalorder %s25, 0
    %p220 = por %p218, %p219
    %s221 = ssub.s32 %s27, %s34
    %p222 = scmp.eq.s32.totalorder %s221, 0
    %s224 = sadd.s32 %s223, 1
    %s225 = scalar_select %p222, %s223, %s224
    %p228 = pneg %p222
    %p229 = scmp.eq.s32.totalorder %s19, 3
    %p230 = por %p228, %p229
    %p231 = scmp.ne.s32.totalorder %s223, %s226
    %p232 = scmp.eq.s32.totalorder %s19, 0
    %p233 = por %p231, %p232
    %p234 = scmp.ne.s32.totalorder %s223, %s226
    %p235 = scmp.eq.s32.totalorder %s24, 3
    %p236 = por %p234, %p235
    %p237 = scmp.ne.s32.totalorder %s226, %s227
    %p238 = scmp.eq.s32.totalorder %s24, 0
    %p239 = por %p237, %p238
    %p240 = scmp.ne.s32.totalorder %s226, %s227
    %p241 = scmp.eq.s32.totalorder %s25, 3
    %p242 = por %p240, %p241
    %p244 = scmp.ne.s32.totalorder %s227, %s243
    %p245 = scmp.eq.s32.totalorder %s25, 0
    %p246 = por %p244, %p245
    %s247 = ssub.s32 %s27, %s34
    %p248 = scmp.eq.s32.totalorder %s247, 0
    %s250 = sadd.s32 %s249, 1
    %s251 = scalar_select %p248, %s249, %s250
    %p254 = pneg %p248
    %p255 = scmp.eq.s32.totalorder %s19, 3
    %p256 = por %p254, %p255
    %p257 = scmp.ne.s32.totalorder %s249, %s252
    %p258 = scmp.eq.s32.totalorder %s19, 0
    %p259 = por %p257, %p258
    %p260 = scmp.ne.s32.totalorder %s249, %s252
    %p261 = scmp.eq.s32.totalorder %s24, 3
    %p262 = por %p260, %p261
    %p263 = scmp.ne.s32.totalorder %s252, %s253
    %p264 = scmp.eq.s32.totalorder %s24, 0
    %p265 = por %p263, %p264
    %p266 = scmp.ne.s32.totalorder %s252, %s253
    %p267 = scmp.eq.s32.totalorder %s25, 3
    %p268 = por %p266, %p267
    %p270 = scmp.ne.s32.totalorder %s253, %s269
    %p271 = scmp.eq.s32.totalorder %s25, 0
    %p272 = por %p270, %p271
    %s273 = ssub.s32 %s27, %s34
    %p274 = scmp.eq.s32.totalorder %s273, 0
    %s276 = sadd.s32 %s275, 1
    %s277 = scalar_select %p274, %s275, %s276
    %p280 = pneg %p274
    %p281 = scmp.eq.s32.totalorder %s19, 3
    %p282 = por %p280, %p281
    %p283 = scmp.ne.s32.totalorder %s275, %s278
    %p284 = scmp.eq.s32.totalorder %s19, 0
    %p285 = por %p283, %p284
    %p286 = scmp.ne.s32.totalorder %s275, %s278
    %p287 = scmp.eq.s32.totalorder %s24, 3
    %p288 = por %p286, %p287
    %p289 = scmp.ne.s32.totalorder %s278, %s279
    %p290 = scmp.eq.s32.totalorder %s24, 0
    %p291 = por %p289, %p290
    %p292 = scmp.ne.s32.totalorder %s278, %s279
    %p293 = scmp.eq.s32.totalorder %s25, 3
    %p294 = por %p292, %p293
    %p296 = scmp.ne.s32.totalorder %s279, %s295
    %p297 = scmp.eq.s32.totalorder %s25, 0
    %p298 = por %p296, %p297
    %s299 = ssub.s32 %s27, %s34
    %p300 = scmp.eq.s32.totalorder %s299, 0
    %s302 = sadd.s32 %s301, 1
    %s303 = scalar_select %p300, %s301, %s302
    %p306 = pneg %p300
    %p307 = scmp.eq.s32.totalorder %s19, 3
    %p308 = por %p306, %p307
    %p309 = scmp.ne.s32.totalorder %s301, %s304
    %p310 = scmp.eq.s32.totalorder %s19, 0
    %p311 = por %p309, %p310
    %p312 = scmp.ne.s32.totalorder %s301, %s304
    %p313 = scmp.eq.s32.totalorder %s24, 3
    %p314 = por %p312, %p313
    %p315 = scmp.ne.s32.totalorder %s304, %s305
    %p316 = scmp.eq.s32.totalorder %s24, 0
    %p317 = por %p315, %p316
    %p318 = scmp.ne.s32.totalorder %s304, %s305
    %p319 = scmp.eq.s32.totalorder %s25, 3
    %p320 = por %p318, %p319
    %p322 = scmp.ne.s32.totalorder %s305, %s321
    %p323 = scmp.eq.s32.totalorder %s25, 0
    %p324 = por %p322, %p323
    %s326 = sadd.s32 %s325, 1
    %p329 = scmp.eq.s32.totalorder %s19, 3
    %p330 = scmp.ne.s32.totalorder %s325, %s327
    %p331 = scmp.eq.s32.totalorder %s19, 0
    %p332 = por %p330, %p331
    %p333 = scmp.ne.s32.totalorder %s325, %s327
    %p334 = scmp.eq.s32.totalorder %s24, 3
    %p335 = por %p333, %p334
    %p336 = scmp.ne.s32.totalorder %s327, %s328
    %p337 = scmp.eq.s32.totalorder %s24, 0
    %p338 = por %p336, %p337
    %p339 = scmp.ne.s32.totalorder %s327, %s328
    %p340 = scmp.eq.s32.totalorder %s25, 3
    %p341 = por %p339, %p340
    %p343 = scmp.ne.s32.totalorder %s328, %s342
    %p344 = scmp.eq.s32.totalorder %s25, 0
    %p345 = por %p343, %p344
    %s347 = sadd.s32 %s346, 1
    %p350 = scmp.eq.s32.totalorder %s19, 3
    %p351 = scmp.ne.s32.totalorder %s346, %s348
    %p352 = scmp.eq.s32.totalorder %s19, 0
    %p353 = por %p351, %p352
    %p354 = scmp.ne.s32.totalorder %s346, %s348
    %p355 = scmp.eq.s32.totalorder %s24, 3
    %p356 = por %p354, %p355
    %p357 = scmp.ne.s32.totalorder %s348, %s349
    %p358 = scmp.eq.s32.totalorder %s24, 0
    %p359 = por %p357, %p358
    %p360 = scmp.ne.s32.totalorder %s348, %s349
    %p361 = scmp.eq.s32.totalorder %s25, 3
    %p362 = por %p360, %p361
    %p364 = scmp.ne.s32.totalorder %s349, %s363
    %p365 = scmp.eq.s32.totalorder %s25, 0
    %p366 = por %p364, %p365
    %s367 = ssub.s32 %s26, %s38
    %p368 = scmp.eq.s32.totalorder %s367, 0
    %s370 = sadd.s32 %s369, 1
    %s371 = scalar_select %p368, %s369, %s370
    %p374 = pneg %p368
    %p375 = scmp.eq.s32.totalorder %s19, 3
    %p376 = por %p374, %p375
    %p377 = scmp.ne.s32.totalorder %s369, %s372
    %p378 = scmp.eq.s32.totalorder %s19, 0
    %p379 = por %p377, %p378
    %p380 = scmp.ne.s32.totalorder %s369, %s372
    %p381 = scmp.eq.s32.totalorder %s24, 3
    %p382 = por %p380, %p381
    %p383 = scmp.ne.s32.totalorder %s372, %s373
    %p384 = scmp.eq.s32.totalorder %s24, 0
    %p385 = por %p383, %p384
    %p386 = scmp.ne.s32.totalorder %s372, %s373
    %p387 = scmp.eq.s32.totalorder %s25, 3
    %p388 = por %p386, %p387
    %p390 = scmp.ne.s32.totalorder %s373, %s389
    %p391 = scmp.eq.s32.totalorder %s25, 0
    %p392 = por %p390, %p391
    %p393 = scmp.le.s32.totalorder 1, %s19
    %p394 = scmp.lt.s32.totalorder %s19, 5
    %p395 = pnand %p393, %p394
    %p396 = pneg %p395
    // Predicated region
    $region9: #{transformer_forward.1} parent=5 // pred_check
      _
    $region10: #{transformer_forward.1} parent=5 // pred_check_branch
      %398 = sbr.rel (%p395) target = $region12
    $region11: #{transformer_forward.1} parent=5 // pred_region
      %s399 = ssub.s32 %s19, 1
      // Predicated region
      $region13: #{transformer_forward.1} parent=11 // pred_check
        %p400 = pneg %p338
      $region14: #{transformer_forward.1} parent=11 // pred_check_branch
        %402 = sbr.rel (%p400) target = $region16
      $region15: #{transformer_forward.1} parent=11 // pred_region
        _
      $region16: #{transformer_forward.1} parent=11 // pred_fallthru
        _
      // Predicated region
      $region17: #{transformer_forward.1} parent=11 // pred_check
        %p403 = pneg %p359
      $region18: #{transformer_forward.1} parent=11 // pred_check_branch
        %405 = sbr.rel (%p403) target = $region20
      $region19: #{transformer_forward.1} parent=11 // pred_region
        _
      $region20: #{transformer_forward.1} parent=11 // pred_fallthru
        _
    $region12: #{transformer_forward.1} parent=5 // pred_fallthru
      _
    %p406 = scmp.lt.s32.totalorder %s19, 4
    // Predicated region
    $region21: #{transformer_forward.1} parent=5 // pred_check
      %p407 = pneg %p406
    $region22: #{transformer_forward.1} parent=5 // pred_check_branch
      %409 = sbr.rel (%p407) target = $region24
    $region23: #{transformer_forward.1} parent=5 // pred_region
      // Predicated region
      $region25: #{transformer_forward.1} parent=23 // pred_check
        %p410 = pneg %p51
      $region26: #{transformer_forward.1} parent=23 // pred_check_branch
        %412 = sbr.rel (%p410) target = $region28
      $region27: #{transformer_forward.1} parent=23 // pred_region
        %p413 = scmp.lt.s32.totalorder %s26, 1
        %s414 = scalar_select %p413, %s26, 1
        %s415 = smul.addr %s414, 8
        %s416 = scalar_lea.vmem %s0, %s415
      $region28: #{transformer_forward.1} parent=23 // pred_fallthru
        _
      // Predicated region
      $region29: #{transformer_forward.1} parent=23 // pred_check
        %p417 = pneg %p77
      $region30: #{transformer_forward.1} parent=23 // pred_check_branch
        %419 = sbr.rel (%p417) target = $region32
      $region31: #{transformer_forward.1} parent=23 // pred_region
        %p420 = scmp.lt.s32.totalorder %s27, 1
        %s421 = scalar_select %p420, %s27, 1
        %s422 = scalar_lea.vmem %s1, %s421
      $region32: #{transformer_forward.1} parent=23 // pred_fallthru
        _
      // Predicated region
      $region33: #{transformer_forward.1} parent=23 // pred_check
        %p423 = pneg %p103
      $region34: #{transformer_forward.1} parent=23 // pred_check_branch
        %425 = sbr.rel (%p423) target = $region36
      $region35: #{transformer_forward.1} parent=23 // pred_region
        %p426 = scmp.lt.s32.totalorder %s27, 1
        %s427 = scalar_select %p426, %s27, 1
        %s428 = scalar_lea.vmem %s2, %s427
      $region36: #{transformer_forward.1} parent=23 // pred_fallthru
        _
      // Predicated region
      $region37: #{transformer_forward.1} parent=23 // pred_check
        %p429 = pneg %p129
      $region38: #{transformer_forward.1} parent=23 // pred_check_branch
        %431 = sbr.rel (%p429) target = $region40
      $region39: #{transformer_forward.1} parent=23 // pred_region
        %p432 = scmp.lt.s32.totalorder %s27, 1
        %s433 = scalar_select %p432, %s27, 1
        %s434 = smul.addr %s433, 4
        %s435 = smul.addr %s434, 8
        %s436 = scalar_lea.vmem %s3, %s435
      $region40: #{transformer_forward.1} parent=23 // pred_fallthru
        _
      // Predicated region
      $region41: #{transformer_forward.1} parent=23 // pred_check
        %p437 = pneg %p155
      $region42: #{transformer_forward.1} parent=23 // pred_check_branch
        %439 = sbr.rel (%p437) target = $region44
      $region43: #{transformer_forward.1} parent=23 // pred_region
        %p440 = scmp.lt.s32.totalorder %s27, 1
        %s441 = scalar_select %p440, %s27, 1
        %s442 = smul.addr %s441, 4
        %s443 = smul.addr %s442, 8
        %s444 = scalar_lea.vmem %s4, %s443
      $region44: #{transformer_forward.1} parent=23 // pred_fallthru
        _
      // Predicated region
      $region45: #{transformer_forward.1} parent=23 // pred_check
        %p445 = pneg %p181
      $region46: #{transformer_forward.1} parent=23 // pred_check_branch
        %447 = sbr.rel (%p445) target = $region48
      $region47: #{transformer_forward.1} parent=23 // pred_region
        %p448 = scmp.lt.s32.totalorder %s27, 1
        %s449 = scalar_select %p448, %s27, 1
        %s450 = scalar_lea.vmem %s5, %s449
      $region48: #{transformer_forward.1} parent=23 // pred_fallthru
        _
      // Predicated region
      $region49: #{transformer_forward.1} parent=23 // pred_check
        %p451 = pneg %p207
      $region50: #{transformer_forward.1} parent=23 // pred_check_branch
        %453 = sbr.rel (%p451) target = $region52
      $region51: #{transformer_forward.1} parent=23 // pred_region
        %p454 = scmp.lt.s32.totalorder %s27, 1
        %s455 = scalar_select %p454, %s27, 1
        %s456 = scalar_lea.vmem %s6, %s455
      $region52: #{transformer_forward.1} parent=23 // pred_fallthru
        _
      // Predicated region
      $region53: #{transformer_forward.1} parent=23 // pred_check
        %p457 = pneg %p233
      $region54: #{transformer_forward.1} parent=23 // pred_check_branch
        %459 = sbr.rel (%p457) target = $region56
      $region55: #{transformer_forward.1} parent=23 // pred_region
        %p460 = scmp.lt.s32.totalorder %s27, 1
        %s461 = scalar_select %p460, %s27, 1
        %s462 = smul.addr %s461, 4
        %s463 = smul.addr %s462, 8
        %s464 = scalar_lea.vmem %s7, %s463
      $region56: #{transformer_forward.1} parent=23 // pred_fallthru
        _
      // Predicated region
      $region57: #{transformer_forward.1} parent=23 // pred_check
        %p465 = pneg %p259
      $region58: #{transformer_forward.1} parent=23 // pred_check_branch
        %467 = sbr.rel (%p465) target = $region60
      $region59: #{transformer_forward.1} parent=23 // pred_region
        %p468 = scmp.lt.s32.totalorder %s27, 1
        %s469 = scalar_select %p468, %s27, 1
        %s470 = scalar_lea.vmem %s8, %s469
      $region60: #{transformer_forward.1} parent=23 // pred_fallthru
        _
      // Predicated region
      $region61: #{transformer_forward.1} parent=23 // pred_check
        %p471 = pneg %p285
      $region62: #{transformer_forward.1} parent=23 // pred_check_branch
        %473 = sbr.rel (%p471) target = $region64
      $region63: #{transformer_forward.1} parent=23 // pred_region
        %p474 = scmp.lt.s32.totalorder %s27, 1
        %s475 = scalar_select %p474, %s27, 1
        %s476 = smul.addr %s475, 8
        %s477 = smul.addr %s476, 8
        %s478 = scalar_lea.vmem %s9, %s477
      $region64: #{transformer_forward.1} parent=23 // pred_fallthru
        _
      // Predicated region
      $region65: #{transformer_forward.1} parent=23 // pred_check
        %p479 = pneg %p311
      $region66: #{transformer_forward.1} parent=23 // pred_check_branch
        %481 = sbr.rel (%p479) target = $region68
      $region67: #{transformer_forward.1} parent=23 // pred_region
        %p482 = scmp.lt.s32.totalorder %s27, 1
        %s483 = scalar_select %p482, %s27, 1
        %s484 = scalar_lea.vmem %s10, %s483
      $region68: #{transformer_forward.1} parent=23 // pred_fallthru
        _
    $region24: #{transformer_forward.1} parent=5 // pred_fallthru
      _
    %p485 = scmp.le.s32.totalorder 1, %s19
    %p486 = scmp.lt.s32.totalorder %s19, 5
    %p487 = pnand %p485, %p486
    %p488 = pneg %p487
    // Predicated region
    $region69: #{transformer_forward.1} parent=5 // pred_check
      _
    $region70: #{transformer_forward.1} parent=5 // pred_check_branch
      %490 = sbr.rel (%p487) target = $region72
    $region71: #{transformer_forward.1} parent=5 // pred_region
      %s491 = ssub.s32 %s19, 1
      %p492 = scmp.lt.s32.totalorder %s28, 1
      %s493 = scalar_select %p492, %s28, 1
      %s494 = smul.addr %s493, 8
      %s495 = scalar_lea.vmem %s0, %s494
      %p496 = pneg %p57
      %p497 = pneg %p54
      %p498 = scmp.lt.s32.totalorder %s29, 1
      %s499 = scalar_select %p498, %s29, 1
      %s500 = scalar_lea.vmem %s1, %s499
      %p501 = pneg %p83
      %p502 = pneg %p80
      %p503 = scmp.lt.s32.totalorder %s29, 1
      %s504 = scalar_select %p503, %s29, 1
      %s505 = scalar_lea.vmem %s2, %s504
      %p506 = pneg %p109
      %p507 = pneg %p106
      %p508 = scmp.lt.s32.totalorder %s29, 1
      %s509 = scalar_select %p508, %s29, 1
      %s510 = smul.addr %s509, 4
      %s511 = smul.addr %s510, 8
      %s512 = scalar_lea.vmem %s3, %s511
      %p513 = pneg %p135
      %p514 = pneg %p132
      %p515 = scmp.lt.s32.totalorder %s29, 1
      %s516 = scalar_select %p515, %s29, 1
      %s517 = smul.addr %s516, 4
      %s518 = smul.addr %s517, 8
      %s519 = scalar_lea.vmem %s4, %s518
      %p520 = pneg %p161
      %p521 = pneg %p158
      %p522 = scmp.lt.s32.totalorder %s29, 1
      %s523 = scalar_select %p522, %s29, 1
      %s524 = scalar_lea.vmem %s5, %s523
      %p525 = pneg %p187
      %p526 = pneg %p184
      %p527 = scmp.lt.s32.totalorder %s29, 1
      %s528 = scalar_select %p527, %s29, 1
      %s529 = scalar_lea.vmem %s6, %s528
      %p530 = pneg %p213
      %p531 = pneg %p210
      %p532 = scmp.lt.s32.totalorder %s29, 1
      %s533 = scalar_select %p532, %s29, 1
      %s534 = smul.addr %s533, 4
      %s535 = smul.addr %s534, 8
      %s536 = scalar_lea.vmem %s7, %s535
      %p537 = pneg %p239
      %p538 = pneg %p236
      %p539 = scmp.lt.s32.totalorder %s29, 1
      %s540 = scalar_select %p539, %s29, 1
      %s541 = scalar_lea.vmem %s8, %s540
      %p542 = pneg %p265
      %p543 = pneg %p262
      %p544 = scmp.lt.s32.totalorder %s29, 1
      %s545 = scalar_select %p544, %s29, 1
      %s546 = smul.addr %s545, 8
      %s547 = smul.addr %s546, 8
      %s548 = scalar_lea.vmem %s9, %s547
      %p549 = pneg %p291
      %p550 = pneg %p288
      %p551 = scmp.lt.s32.totalorder %s29, 1
      %s552 = scalar_select %p551, %s29, 1
      %s553 = scalar_lea.vmem %s10, %s552
      %p554 = pneg %p317
      %p555 = pneg %p314
      %p556 = pneg %p338
      %p557 = pneg %p335
      %p558 = pneg %p359
      %p559 = pneg %p356
      %p560 = pneg %p385
      %p561 = pneg %p382
      %p562 = scmp.lt.s32.totalorder %s28, 1
      %s563 = scalar_select %p562, %s28, 1
      %s564 = smul.addr %s563, 8
      %s565 = scalar_lea.vmem %s13, %s564
      %p566 = scmp.lt.s32.totalorder %s28, 1
      %s567 = scalar_select %p566, %s28, 1
      %s568 = smul.addr %s567, 8
      %s569 = scalar_lea.vmem %s0, %s568
      %p570 = scmp.lt.s32.totalorder %s29, 1
      %s571 = scalar_select %p570, %s29, 1
      %s572 = scalar_lea.vmem %s1, %s571
      %p573 = scmp.lt.s32.totalorder %s29, 1
      %s574 = scalar_select %p573, %s29, 1
      %s575 = scalar_lea.vmem %s2, %s574
      %p576 = scmp.lt.s32.totalorder %s29, 1
      %s577 = scalar_select %p576, %s29, 1
      %s578 = smul.addr %s577, 4
      %s579 = smul.addr %s578, 8
      %s580 = scalar_lea.vmem %s3, %s579
      %p581 = scmp.lt.s32.totalorder %s29, 1
      %s582 = scalar_select %p581, %s29, 1
      %s583 = smul.addr %s582, 4
      %s584 = smul.addr %s583, 8
      %s585 = scalar_lea.vmem %s4, %s584
      %p586 = scmp.lt.s32.totalorder %s29, 1
      %s587 = scalar_select %p586, %s29, 1
      %s588 = scalar_lea.vmem %s5, %s587
      %p589 = scmp.lt.s32.totalorder %s29, 1
      %s590 = scalar_select %p589, %s29, 1
      %s591 = scalar_lea.vmem %s6, %s590
      %p592 = scmp.lt.s32.totalorder %s29, 1
      %s593 = scalar_select %p592, %s29, 1
      %s594 = smul.addr %s593, 4
      %s595 = smul.addr %s594, 8
      %s596 = scalar_lea.vmem %s7, %s595
      %p597 = scmp.lt.s32.totalorder %s29, 1
      %s598 = scalar_select %p597, %s29, 1
      %s599 = scalar_lea.vmem %s8, %s598
      %p600 = scmp.lt.s32.totalorder %s29, 1
      %s601 = scalar_select %p600, %s29, 1
      %s602 = smul.addr %s601, 8
      %s603 = smul.addr %s602, 8
      %s604 = scalar_lea.vmem %s9, %s603
      %p605 = scmp.lt.s32.totalorder %s29, 1
      %s606 = scalar_select %p605, %s29, 1
      %s607 = scalar_lea.vmem %s10, %s606
      %p608 = scmp.lt.s32.totalorder %s28, 1
      %s609 = scalar_select %p608, %s28, 1
      %s610 = smul.addr %s609, 8
      %s611 = scalar_lea.vmem %s13, %s610
      %p612 = scmp.eq.s32.totalorder %s29, 0
      // Predicated region
      $region73: #{transformer_forward.1} parent=71 // pred_check
        %p613 = pneg %p612
      $region74: #{transformer_forward.1} parent=71 // pred_check_branch
        %615 = sbr.rel (%p613) target = $region76
      $region75: #{transformer_forward.1} parent=71 // pred_region
        %v616 = vld [vmem:[%s569] sm:$0xff]
        %vm617 = vcmask 261120
        %618 = vst.msk [vmem:[#allocation2] sm:$0xff] %vm617, %v616
      $region76: #{transformer_forward.1} parent=71 // pred_fallthru
        _
      %v619 = vld [vmem:[#allocation2] sm:$0xff]
      %v620 = vld [vmem:[%s572] sm:$0x1]
      %v621 = vld [vmem:[%s575] sm:$0x1]
      %vm622 = vcmask 261120
      %v623 = vsel %vm622, %v619, 0.0
      %624 = vadd.xlane.f32.xlu0 %v623
      %v625 = vpop.xlane.xlu0 %624
      %v626 = vrcp.pop 32.0
      %v627 = vmul.f32 %v625, %v626
      %v628 = vsub.f32 %v619, %v627
      %v629 = vmul.f32 %v628, %v628
      %v630 = vsel %vm622, %v629, 0.0
      %631 = vadd.xlane.f32.xlu0 %v630
      %v632 = vpop.xlane.xlu0 %631
      %v633 = vmul.f32 %v632, %v626
      %v634 = vadd.f32 %v633, 1e-05
      %v635 = vrsqrt.pop %v634
      %v636 = vmul.f32 %v628, %v635
      %v638 = vlaneseq
      %v639 = vshrl.u32 %v638, 7
      %v640 = vsub.s32 0, %v639
      %v641 = vrot.slane %v620, %v640
      %v643 = vmul.f32 %v636, %v641
      %v645 = vlaneseq
      %v646 = vshrl.u32 %v645, 7
      %v647 = vsub.s32 0, %v646
      %v648 = vrot.slane %v621, %v647
      %v650 = vadd.f32 %v643, %v648
      %v651 = vld [vmem:[%s580] sm:$0xff]
      %v652 = vld [vmem:[%s580 + $0x8] sm:$0xff]
      %v653 = vld [vmem:[%s580 + $0x10] sm:$0xff]
      %v654 = vld [vmem:[%s580 + $0x18] sm:$0xff]
      %v656 = vsel %vm622, %v650, 0
      %658 = vmatprep.subr.mxu0 0.0
      %659 = vmatpush1.msra.mxu0 0.0
      %660 = vmatprep.subr.mxu0 0.0
      %661 = vmatpush1.msra.mxu0 0.0
      %662 = vmatprep.subr.mxu0 0.0
      %663 = vmatpush1.msra.mxu0 0.0
      %664 = vmatprep.subr.mxu0 0.0
      %665 = vmatpush1.msra.mxu0 0.0
      %666 = vmatprep.subr.mxu0 0.0
      %667 = vmatpush1.msra.mxu0 0.0
      %668 = vmatprep.subr.mxu0 0.0
      %669 = vmatpush1.msra.mxu0 0.0
      %670 = vmatprep.subr.mxu0 0.0
      %671 = vmatpush1.msra.mxu0 0.0
      %672 = vmatprep.subr.mxu0 0.0
      %673 = vmatpush1.msra.mxu0 0.0
      %674 = vmatprep.subr.mxu0 0.0
      %675 = vmatpush1.msra.mxu0 0.0
      %676 = vmatprep.subr.mxu0 0.0
      %677 = vmatpush1.msra.mxu0 0.0
      %678 = vmatprep.subr.mxu0 0.0
      %679 = vmatpush1.msra.mxu0 0.0
      %680 = vmatprep.subr.mxu0 0.0
      %681 = vmatpush1.msra.mxu0 0.0
      %682 = vmatprep.subr.mxu0 0.0
      %683 = vmatpush1.msra.mxu0 %v654
      %684 = vmatprep.subr.mxu0 0.0
      %685 = vmatpush1.msra.mxu0 %v653
      %686 = vmatprep.subr.mxu0 0.0
      %687 = vmatpush1.msra.mxu0 %v652
      %688 = vmatprep.subr.mxu0 0.0
      %689 = vmatpush1.msra.mxu0 %v651
      %690 = vmatprep.subr.mxu0 0.0
      %691 = vmatpush2.msra.mxu0 0.0
      %692 = vmatprep.subr.mxu0 0.0
      %693 = vmatpush2.msra.mxu0 0.0
      %694 = vmatprep.subr.mxu0 0.0
      %695 = vmatpush2.msra.mxu0 0.0
      %696 = vmatprep.subr.mxu0 0.0
      %697 = vmatpush2.msra.mxu0 0.0
      %698 = vmatprep.subr.mxu0 0.0
      %699 = vmatpush2.msra.mxu0 0.0
      %700 = vmatprep.subr.mxu0 0.0
      %701 = vmatpush2.msra.mxu0 0.0
      %702 = vmatprep.subr.mxu0 0.0
      %703 = vmatpush2.msra.mxu0 0.0
      %704 = vmatprep.subr.mxu0 0.0
      %705 = vmatpush2.msra.mxu0 0.0
      %706 = vmatprep.subr.mxu0 0.0
      %707 = vmatpush2.msra.mxu0 0.0
      %708 = vmatprep.subr.mxu0 0.0
      %709 = vmatpush2.msra.mxu0 0.0
      %710 = vmatprep.subr.mxu0 0.0
      %711 = vmatpush2.msra.mxu0 0.0
      %712 = vmatprep.subr.mxu0 0.0
      %713 = vmatpush2.msra.mxu0 0.0
      %714 = vmatprep.subr.mxu0 0.0
      %715 = vmatpush2.msra.mxu0 0.0
      %716 = vmatprep.subr.mxu0 0.0
      %717 = vmatpush2.msra.mxu0 0.0
      %718 = vmatprep.subr.mxu0 0.0
      %719 = vmatpush2.msra.mxu0 0.0
      %720 = vmatprep.subr.mxu0 0.0
      %721 = vmatpush2.msra.mxu0 0.0
      %722 = vmatprep.mubr.f32.mxu0 0.0
      %723 = vmatmul.mubr.f32.gmra.mxu0 %v656
      %v724 = vpop.f32.mrf.mxu0
      %v725 = vadd.f32 0.0, %v724
      %v726 = vpop.f32.mrf.mxu0
      %727 = vdwg.mxu0
      %729 = vrot.lane.b32.xlu0 %v725, 96
      %v730 = vpop.permute.xlu0 %729
      %vm731 = vcmask 64512
      %v732 = vsel %vm731, %v725, 0
      %v734 = vsel %vm731, %v730, 0
      %736 = vmatprep.subr.mxu0 0.0
      %737 = vmatpush1.xpose.msra.mxu0 0.0
      %738 = vmatprep.subr.mxu0 0.0
      %739 = vmatpush1.xpose.msra.mxu0 0.0
      %740 = vmatprep.subr.mxu0 0.0
      %741 = vmatpush1.xpose.msra.mxu0 0.0
      %742 = vmatprep.subr.mxu0 0.0
      %743 = vmatpush1.xpose.msra.mxu0 0.0
      %744 = vmatprep.subr.mxu0 0.0
      %745 = vmatpush1.xpose.msra.mxu0 0.0
      %746 = vmatprep.subr.mxu0 0.0
      %747 = vmatpush1.xpose.msra.mxu0 0.0
      %748 = vmatprep.subr.mxu0 0.0
      %749 = vmatpush1.xpose.msra.mxu0 0.0
      %750 = vmatprep.subr.mxu0 0.0
      %751 = vmatpush1.xpose.msra.mxu0 0.0
      %752 = vmatprep.subr.mxu0 0.0
      %753 = vmatpush1.xpose.msra.mxu0 0.0
      %754 = vmatprep.subr.mxu0 0.0
      %755 = vmatpush1.xpose.msra.mxu0 0.0
      %756 = vmatprep.subr.mxu0 0.0
      %757 = vmatpush1.xpose.msra.mxu0 0.0
      %758 = vmatprep.subr.mxu0 0.0
      %759 = vmatpush1.xpose.msra.mxu0 0.0
      %760 = vmatprep.subr.mxu0 0.0
      %761 = vmatpush1.xpose.msra.mxu0 0.0
      %762 = vmatprep.subr.mxu0 0.0
      %763 = vmatpush1.xpose.msra.mxu0 0.0
      %764 = vmatprep.subr.mxu0 0.0
      %765 = vmatpush1.xpose.msra.mxu0 0.0
      %766 = vmatprep.subr.mxu0 0.0
      %767 = vmatpush1.xpose.msra.mxu0 %v734
      %768 = vmatprep.subr.mxu0 0.0
      %769 = vmatpush2.xpose.msra.mxu0 0.0
      %770 = vmatprep.subr.mxu0 0.0
      %771 = vmatpush2.xpose.msra.mxu0 0.0
      %772 = vmatprep.subr.mxu0 0.0
      %773 = vmatpush2.xpose.msra.mxu0 0.0
      %774 = vmatprep.subr.mxu0 0.0
      %775 = vmatpush2.xpose.msra.mxu0 0.0
      %776 = vmatprep.subr.mxu0 0.0
      %777 = vmatpush2.xpose.msra.mxu0 0.0
      %778 = vmatprep.subr.mxu0 0.0
      %779 = vmatpush2.xpose.msra.mxu0 0.0
      %780 = vmatprep.subr.mxu0 0.0
      %781 = vmatpush2.xpose.msra.mxu0 0.0
      %782 = vmatprep.subr.mxu0 0.0
      %783 = vmatpush2.xpose.msra.mxu0 0.0
      %784 = vmatprep.subr.mxu0 0.0
      %785 = vmatpush2.xpose.msra.mxu0 0.0
      %786 = vmatprep.subr.mxu0 0.0
      %787 = vmatpush2.xpose.msra.mxu0 0.0
      %788 = vmatprep.subr.mxu0 0.0
      %789 = vmatpush2.xpose.msra.mxu0 0.0
      %790 = vmatprep.subr.mxu0 0.0
      %791 = vmatpush2.xpose.msra.mxu0 0.0
      %792 = vmatprep.subr.mxu0 0.0
      %793 = vmatpush2.xpose.msra.mxu0 0.0
      %794 = vmatprep.subr.mxu0 0.0
      %795 = vmatpush2.xpose.msra.mxu0 0.0
      %796 = vmatprep.subr.mxu0 0.0
      %797 = vmatpush2.xpose.msra.mxu0 0.0
      %798 = vmatprep.subr.mxu0 0.0
      %799 = vmatpush2.xpose.msra.mxu0 0.0
      %800 = vmatprep.mubr.f32.mxu0 0.0
      %801 = vmatmul.mubr.f32.gmra.mxu0 %v732
      %v802 = vpop.f32.mrf.mxu0
      %v803 = vadd.f32 0.0, %v802
      %v804 = vpop.f32.mrf.mxu0
      %805 = vdwg.mxu0
      %v806 = vsel %vm731, %v803, -inf
      %807 = vmax.xlane.f32.xlu0 %v806
      %v808 = vpop.xlane.xlu0 %807
      %v809 = vsub.f32 %v803, %v808
      %v810 = vmul.f32 %v809, 1.442695
      %v811 = vpow.pop %v810
      %v812 = vsel %vm731, %v811, 0.0
      %813 = vadd.xlane.f32.xlu0 %v812
      %v814 = vpop.xlane.xlu0 %813
      %v815 = vrcp.pop %v814
      %v816 = vmul.f32 %v811, %v815
      %817 = vrot.lane.b32.xlu0 %v725, 64
      %v818 = vpop.permute.xlu0 %817
      %v821 = vsel %vm731, %v816, 0
      %823 = vmatprep.subr.mxu0 0.0
      %824 = vmatpush1.msra.mxu0 0.0
      %825 = vmatprep.subr.mxu0 0.0
      %826 = vmatpush1.msra.mxu0 0.0
      %827 = vmatprep.subr.mxu0 0.0
      %828 = vmatpush1.msra.mxu0 0.0
      %829 = vmatprep.subr.mxu0 0.0
      %830 = vmatpush1.msra.mxu0 0.0
      %831 = vmatprep.subr.mxu0 0.0
      %832 = vmatpush1.msra.mxu0 0.0
      %833 = vmatprep.subr.mxu0 0.0
      %834 = vmatpush1.msra.mxu0 0.0
      %835 = vmatprep.subr.mxu0 0.0
      %836 = vmatpush1.msra.mxu0 0.0
      %837 = vmatprep.subr.mxu0 0.0
      %838 = vmatpush1.msra.mxu0 0.0
      %839 = vmatprep.subr.mxu0 0.0
      %840 = vmatpush1.msra.mxu0 0.0
      %841 = vmatprep.subr.mxu0 0.0
      %842 = vmatpush1.msra.mxu0 0.0
      %843 = vmatprep.subr.mxu0 0.0
      %844 = vmatpush1.msra.mxu0 0.0
      %845 = vmatprep.subr.mxu0 0.0
      %846 = vmatpush1.msra.mxu0 0.0
      %847 = vmatprep.subr.mxu0 0.0
      %848 = vmatpush1.msra.mxu0 0.0
      %849 = vmatprep.subr.mxu0 0.0
      %850 = vmatpush1.msra.mxu0 0.0
      %851 = vmatprep.subr.mxu0 0.0
      %852 = vmatpush1.msra.mxu0 0.0
      %853 = vmatprep.subr.mxu0 0.0
      %854 = vmatpush1.msra.mxu0 %v818
      %855 = vmatprep.subr.mxu0 0.0
      %856 = vmatpush2.msra.mxu0 0.0
      %857 = vmatprep.subr.mxu0 0.0
      %858 = vmatpush2.msra.mxu0 0.0
      %859 = vmatprep.subr.mxu0 0.0
      %860 = vmatpush2.msra.mxu0 0.0
      %861 = vmatprep.subr.mxu0 0.0
      %862 = vmatpush2.msra.mxu0 0.0
      %863 = vmatprep.subr.mxu0 0.0
      %864 = vmatpush2.msra.mxu0 0.0
      %865 = vmatprep.subr.mxu0 0.0
      %866 = vmatpush2.msra.mxu0 0.0
      %867 = vmatprep.subr.mxu0 0.0
      %868 = vmatpush2.msra.mxu0 0.0
      %869 = vmatprep.subr.mxu0 0.0
      %870 = vmatpush2.msra.mxu0 0.0
      %871 = vmatprep.subr.mxu0 0.0
      %872 = vmatpush2.msra.mxu0 0.0
      %873 = vmatprep.subr.mxu0 0.0
      %874 = vmatpush2.msra.mxu0 0.0
      %875 = vmatprep.subr.mxu0 0.0
      %876 = vmatpush2.msra.mxu0 0.0
      %877 = vmatprep.subr.mxu0 0.0
      %878 = vmatpush2.msra.mxu0 0.0
      %879 = vmatprep.subr.mxu0 0.0
      %880 = vmatpush2.msra.mxu0 0.0
      %881 = vmatprep.subr.mxu0 0.0
      %882 = vmatpush2.msra.mxu0 0.0
      %883 = vmatprep.subr.mxu0 0.0
      %884 = vmatpush2.msra.mxu0 0.0
      %885 = vmatprep.subr.mxu0 0.0
      %886 = vmatpush2.msra.mxu0 0.0
      %887 = vmatprep.mubr.f32.mxu0 0.0
      %888 = vmatmul.mubr.f32.gmra.mxu0 %v821
      %v889 = vpop.f32.mrf.mxu0
      %v890 = vadd.f32 0.0, %v889
      %v891 = vpop.f32.mrf.mxu0
      %892 = vdwg.mxu0
      %893 = vrot.lane.b32.xlu0 %v725, 120
      %v894 = vpop.permute.xlu0 %893
      %895 = vrot.lane.b32.xlu0 %v725, 88
      %v896 = vpop.permute.xlu0 %895
      %v897 = vsel %vm731, %v894, 0
      %v899 = vsel %vm731, %v896, 0
      %901 = vmatprep.subr.mxu0 0.0
      %902 = vmatpush1.xpose.msra.mxu0 0.0
      %903 = vmatprep.subr.mxu0 0.0
      %904 = vmatpush1.xpose.msra.mxu0 0.0
      %905 = vmatprep.subr.mxu0 0.0
      %906 = vmatpush1.xpose.msra.mxu0 0.0
      %907 = vmatprep.subr.mxu0 0.0
      %908 = vmatpush1.xpose.msra.mxu0 0.0
      %909 = vmatprep.subr.mxu0 0.0
      %910 = vmatpush1.xpose.msra.mxu0 0.0
      %911 = vmatprep.subr.mxu0 0.0
      %912 = vmatpush1.xpose.msra.mxu0 0.0
      %913 = vmatprep.subr.mxu0 0.0
      %914 = vmatpush1.xpose.msra.mxu0 0.0
      %915 = vmatprep.subr.mxu0 0.0
      %916 = vmatpush1.xpose.msra.mxu0 0.0
      %917 = vmatprep.subr.mxu0 0.0
      %918 = vmatpush1.xpose.msra.mxu0 0.0
      %919 = vmatprep.subr.mxu0 0.0
      %920 = vmatpush1.xpose.msra.mxu0 0.0
      %921 = vmatprep.subr.mxu0 0.0
      %922 = vmatpush1.xpose.msra.mxu0 0.0
      %923 = vmatprep.subr.mxu0 0.0
      %924 = vmatpush1.xpose.msra.mxu0 0.0
      %925 = vmatprep.subr.mxu0 0.0
      %926 = vmatpush1.xpose.msra.mxu0 0.0
      %927 = vmatprep.subr.mxu0 0.0
      %928 = vmatpush1.xpose.msra.mxu0 0.0
      %929 = vmatprep.subr.mxu0 0.0
      %930 = vmatpush1.xpose.msra.mxu0 0.0
      %931 = vmatprep.subr.mxu0 0.0
      %932 = vmatpush1.xpose.msra.mxu0 %v899
      %933 = vmatprep.subr.mxu0 0.0
      %934 = vmatpush2.xpose.msra.mxu0 0.0
      %935 = vmatprep.subr.mxu0 0.0
      %936 = vmatpush2.xpose.msra.mxu0 0.0
      %937 = vmatprep.subr.mxu0 0.0
      %938 = vmatpush2.xpose.msra.mxu0 0.0
      %939 = vmatprep.subr.mxu0 0.0
      %940 = vmatpush2.xpose.msra.mxu0 0.0
      %941 = vmatprep.subr.mxu0 0.0
      %942 = vmatpush2.xpose.msra.mxu0 0.0
      %943 = vmatprep.subr.mxu0 0.0
      %944 = vmatpush2.xpose.msra.mxu0 0.0
      %945 = vmatprep.subr.mxu0 0.0
      %946 = vmatpush2.xpose.msra.mxu0 0.0
      %947 = vmatprep.subr.mxu0 0.0
      %948 = vmatpush2.xpose.msra.mxu0 0.0
      %949 = vmatprep.subr.mxu0 0.0
      %950 = vmatpush2.xpose.msra.mxu0 0.0
      %951 = vmatprep.subr.mxu0 0.0
      %952 = vmatpush2.xpose.msra.mxu0 0.0
      %953 = vmatprep.subr.mxu0 0.0
      %954 = vmatpush2.xpose.msra.mxu0 0.0
      %955 = vmatprep.subr.mxu0 0.0
      %956 = vmatpush2.xpose.msra.mxu0 0.0
      %957 = vmatprep.subr.mxu0 0.0
      %958 = vmatpush2.xpose.msra.mxu0 0.0
      %959 = vmatprep.subr.mxu0 0.0
      %960 = vmatpush2.xpose.msra.mxu0 0.0
      %961 = vmatprep.subr.mxu0 0.0
      %962 = vmatpush2.xpose.msra.mxu0 0.0
      %963 = vmatprep.subr.mxu0 0.0
      %964 = vmatpush2.xpose.msra.mxu0 0.0
      %965 = vmatprep.mubr.f32.mxu0 0.0
      %966 = vmatmul.mubr.f32.gmra.mxu0 %v897
      %v967 = vpop.f32.mrf.mxu0
      %v968 = vadd.f32 0.0, %v967
      %v969 = vpop.f32.mrf.mxu0
      %970 = vdwg.mxu0
      %v971 = vsel %vm731, %v968, -inf
      %972 = vmax.xlane.f32.xlu0 %v971
      %v973 = vpop.xlane.xlu0 %972
      %v974 = vsub.f32 %v968, %v973
      %v975 = vmul.f32 %v974, 1.442695
      %v976 = vpow.pop %v975
      %v977 = vsel %vm731, %v976, 0.0
      %978 = vadd.xlane.f32.xlu0 %v977
      %v979 = vpop.xlane.xlu0 %978
      %v980 = vrcp.pop %v979
      %v981 = vmul.f32 %v976, %v980
      %982 = vrot.lane.b32.xlu0 %v725, 56
      %v983 = vpop.permute.xlu0 %982
      %v986 = vsel %vm731, %v981, 0
      %988 = vmatprep.subr.mxu0 0.0
      %989 = vmatpush1.msra.mxu0 0.0
      %990 = vmatprep.subr.mxu0 0.0
      %991 = vmatpush1.msra.mxu0 0.0
      %992 = vmatprep.subr.mxu0 0.0
      %993 = vmatpush1.msra.mxu0 0.0
      %994 = vmatprep.subr.mxu0 0.0
      %995 = vmatpush1.msra.mxu0 0.0
      %996 = vmatprep.subr.mxu0 0.0
      %997 = vmatpush1.msra.mxu0 0.0
      %998 = vmatprep.subr.mxu0 0.0
      %999 = vmatpush1.msra.mxu0 0.0
      %1000 = vmatprep.subr.mxu0 0.0
      %1001 = vmatpush1.msra.mxu0 0.0
      %1002 = vmatprep.subr.mxu0 0.0
      %1003 = vmatpush1.msra.mxu0 0.0
      %1004 = vmatprep.subr.mxu0 0.0
      %1005 = vmatpush1.msra.mxu0 0.0
      %1006 = vmatprep.subr.mxu0 0.0
      %1007 = vmatpush1.msra.mxu0 0.0
      %1008 = vmatprep.subr.mxu0 0.0
      %1009 = vmatpush1.msra.mxu0 0.0
      %1010 = vmatprep.subr.mxu0 0.0
      %1011 = vmatpush1.msra.mxu0 0.0
      %1012 = vmatprep.subr.mxu0 0.0
      %1013 = vmatpush1.msra.mxu0 0.0
      %1014 = vmatprep.subr.mxu0 0.0
      %1015 = vmatpush1.msra.mxu0 0.0
      %1016 = vmatprep.subr.mxu0 0.0
      %1017 = vmatpush1.msra.mxu0 0.0
      %1018 = vmatprep.subr.mxu0 0.0
      %1019 = vmatpush1.msra.mxu0 %v983
      %1020 = vmatprep.subr.mxu0 0.0
      %1021 = vmatpush2.msra.mxu0 0.0
      %1022 = vmatprep.subr.mxu0 0.0
      %1023 = vmatpush2.msra.mxu0 0.0
      %1024 = vmatprep.subr.mxu0 0.0
      %1025 = vmatpush2.msra.mxu0 0.0
      %1026 = vmatprep.subr.mxu0 0.0
      %1027 = vmatpush2.msra.mxu0 0.0
      %1028 = vmatprep.subr.mxu0 0.0
      %1029 = vmatpush2.msra.mxu0 0.0
      %1030 = vmatprep.subr.mxu0 0.0
      %1031 = vmatpush2.msra.mxu0 0.0
      %1032 = vmatprep.subr.mxu0 0.0
      %1033 = vmatpush2.msra.mxu0 0.0
      %1034 = vmatprep.subr.mxu0 0.0
      %1035 = vmatpush2.msra.mxu0 0.0
      %1036 = vmatprep.subr.mxu0 0.0
      %1037 = vmatpush2.msra.mxu0 0.0
      %1038 = vmatprep.subr.mxu0 0.0
      %1039 = vmatpush2.msra.mxu0 0.0
      %1040 = vmatprep.subr.mxu0 0.0
      %1041 = vmatpush2.msra.mxu0 0.0
      %1042 = vmatprep.subr.mxu0 0.0
      %1043 = vmatpush2.msra.mxu0 0.0
      %1044 = vmatprep.subr.mxu0 0.0
      %1045 = vmatpush2.msra.mxu0 0.0
      %1046 = vmatprep.subr.mxu0 0.0
      %1047 = vmatpush2.msra.mxu0 0.0
      %1048 = vmatprep.subr.mxu0 0.0
      %1049 = vmatpush2.msra.mxu0 0.0
      %1050 = vmatprep.subr.mxu0 0.0
      %1051 = vmatpush2.msra.mxu0 0.0
      %1052 = vmatprep.mubr.f32.mxu0 0.0
      %1053 = vmatmul.mubr.f32.gmra.mxu0 %v986
      %v1054 = vpop.f32.mrf.mxu0
      %v1055 = vadd.f32 0.0, %v1054
      %v1056 = vpop.f32.mrf.mxu0
      %1057 = vdwg.mxu0
      %1058 = vrot.lane.b32.xlu0 %v725, 112
      %v1059 = vpop.permute.xlu0 %1058
      %1060 = vrot.lane.b32.xlu0 %v725, 80
      %v1061 = vpop.permute.xlu0 %1060
      %v1062 = vsel %vm731, %v1059, 0
      %v1064 = vsel %vm731, %v1061, 0
      %1066 = vmatprep.subr.mxu0 0.0
      %1067 = vmatpush1.xpose.msra.mxu0 0.0
      %1068 = vmatprep.subr.mxu0 0.0
      %1069 = vmatpush1.xpose.msra.mxu0 0.0
      %1070 = vmatprep.subr.mxu0 0.0
      %1071 = vmatpush1.xpose.msra.mxu0 0.0
      %1072 = vmatprep.subr.mxu0 0.0
      %1073 = vmatpush1.xpose.msra.mxu0 0.0
      %1074 = vmatprep.subr.mxu0 0.0
      %1075 = vmatpush1.xpose.msra.mxu0 0.0
      %1076 = vmatprep.subr.mxu0 0.0
      %1077 = vmatpush1.xpose.msra.mxu0 0.0
      %1078 = vmatprep.subr.mxu0 0.0
      %1079 = vmatpush1.xpose.msra.mxu0 0.0
      %1080 = vmatprep.subr.mxu0 0.0
      %1081 = vmatpush1.xpose.msra.mxu0 0.0
      %1082 = vmatprep.subr.mxu0 0.0
      %1083 = vmatpush1.xpose.msra.mxu0 0.0
      %1084 = vmatprep.subr.mxu0 0.0
      %1085 = vmatpush1.xpose.msra.mxu0 0.0
      %1086 = vmatprep.subr.mxu0 0.0
      %1087 = vmatpush1.xpose.msra.mxu0 0.0
      %1088 = vmatprep.subr.mxu0 0.0
      %1089 = vmatpush1.xpose.msra.mxu0 0.0
      %1090 = vmatprep.subr.mxu0 0.0
      %1091 = vmatpush1.xpose.msra.mxu0 0.0
      %1092 = vmatprep.subr.mxu0 0.0
      %1093 = vmatpush1.xpose.msra.mxu0 0.0
      %1094 = vmatprep.subr.mxu0 0.0
      %1095 = vmatpush1.xpose.msra.mxu0 0.0
      %1096 = vmatprep.subr.mxu0 0.0
      %1097 = vmatpush1.xpose.msra.mxu0 %v1064
      %1098 = vmatprep.subr.mxu0 0.0
      %1099 = vmatpush2.xpose.msra.mxu0 0.0
      %1100 = vmatprep.subr.mxu0 0.0
      %1101 = vmatpush2.xpose.msra.mxu0 0.0
      %1102 = vmatprep.subr.mxu0 0.0
      %1103 = vmatpush2.xpose.msra.mxu0 0.0
      %1104 = vmatprep.subr.mxu0 0.0
      %1105 = vmatpush2.xpose.msra.mxu0 0.0
      %1106 = vmatprep.subr.mxu0 0.0
      %1107 = vmatpush2.xpose.msra.mxu0 0.0
      %1108 = vmatprep.subr.mxu0 0.0
      %1109 = vmatpush2.xpose.msra.mxu0 0.0
      %1110 = vmatprep.subr.mxu0 0.0
      %1111 = vmatpush2.xpose.msra.mxu0 0.0
      %1112 = vmatprep.subr.mxu0 0.0
      %1113 = vmatpush2.xpose.msra.mxu0 0.0
      %1114 = vmatprep.subr.mxu0 0.0
      %1115 = vmatpush2.xpose.msra.mxu0 0.0
      %1116 = vmatprep.subr.mxu0 0.0
      %1117 = vmatpush2.xpose.msra.mxu0 0.0
      %1118 = vmatprep.subr.mxu0 0.0
      %1119 = vmatpush2.xpose.msra.mxu0 0.0
      %1120 = vmatprep.subr.mxu0 0.0
      %1121 = vmatpush2.xpose.msra.mxu0 0.0
      %1122 = vmatprep.subr.mxu0 0.0
      %1123 = vmatpush2.xpose.msra.mxu0 0.0
      %1124 = vmatprep.subr.mxu0 0.0
      %1125 = vmatpush2.xpose.msra.mxu0 0.0
      %1126 = vmatprep.subr.mxu0 0.0
      %1127 = vmatpush2.xpose.msra.mxu0 0.0
      %1128 = vmatprep.subr.mxu0 0.0
      %1129 = vmatpush2.xpose.msra.mxu0 0.0
      %1130 = vmatprep.mubr.f32.mxu0 0.0
      %1131 = vmatmul.mubr.f32.gmra.mxu0 %v1062
      %v1132 = vpop.f32.mrf.mxu0
      %v1133 = vadd.f32 0.0, %v1132
      %v1134 = vpop.f32.mrf.mxu0
      %1135 = vdwg.mxu0
      %v1136 = vsel %vm731, %v1133, -inf
      %1137 = vmax.xlane.f32.xlu0 %v1136
      %v1138 = vpop.xlane.xlu0 %1137
      %v1139 = vsub.f32 %v1133, %v1138
      %v1140 = vmul.f32 %v1139, 1.442695
      %v1141 = vpow.pop %v1140
      %v1142 = vsel %vm731, %v1141, 0.0
      %1143 = vadd.xlane.f32.xlu0 %v1142
      %v1144 = vpop.xlane.xlu0 %1143
      %v1145 = vrcp.pop %v1144
      %v1146 = vmul.f32 %v1141, %v1145
      %1147 = vrot.lane.b32.xlu0 %v725, 48
      %v1148 = vpop.permute.xlu0 %1147
      %v1151 = vsel %vm731, %v1146, 0
      %1153 = vmatprep.subr.mxu0 0.0
      %1154 = vmatpush1.msra.mxu0 0.0
      %1155 = vmatprep.subr.mxu0 0.0
      %1156 = vmatpush1.msra.mxu0 0.0
      %1157 = vmatprep.subr.mxu0 0.0
      %1158 = vmatpush1.msra.mxu0 0.0
      %1159 = vmatprep.subr.mxu0 0.0
      %1160 = vmatpush1.msra.mxu0 0.0
      %1161 = vmatprep.subr.mxu0 0.0
      %1162 = vmatpush1.msra.mxu0 0.0
      %1163 = vmatprep.subr.mxu0 0.0
      %1164 = vmatpush1.msra.mxu0 0.0
      %1165 = vmatprep.subr.mxu0 0.0
      %1166 = vmatpush1.msra.mxu0 0.0
      %1167 = vmatprep.subr.mxu0 0.0
      %1168 = vmatpush1.msra.mxu0 0.0
      %1169 = vmatprep.subr.mxu0 0.0
      %1170 = vmatpush1.msra.mxu0 0.0
      %1171 = vmatprep.subr.mxu0 0.0
      %1172 = vmatpush1.msra.mxu0 0.0
      %1173 = vmatprep.subr.mxu0 0.0
      %1174 = vmatpush1.msra.mxu0 0.0
      %1175 = vmatprep.subr.mxu0 0.0
      %1176 = vmatpush1.msra.mxu0 0.0
      %1177 = vmatprep.subr.mxu0 0.0
      %1178 = vmatpush1.msra.mxu0 0.0
      %1179 = vmatprep.subr.mxu0 0.0
      %1180 = vmatpush1.msra.mxu0 0.0
      %1181 = vmatprep.subr.mxu0 0.0
      %1182 = vmatpush1.msra.mxu0 0.0
      %1183 = vmatprep.subr.mxu0 0.0
      %1184 = vmatpush1.msra.mxu0 %v1148
      %1185 = vmatprep.subr.mxu0 0.0
      %1186 = vmatpush2.msra.mxu0 0.0
      %1187 = vmatprep.subr.mxu0 0.0
      %1188 = vmatpush2.msra.mxu0 0.0
      %1189 = vmatprep.subr.mxu0 0.0
      %1190 = vmatpush2.msra.mxu0 0.0
      %1191 = vmatprep.subr.mxu0 0.0
      %1192 = vmatpush2.msra.mxu0 0.0
      %1193 = vmatprep.subr.mxu0 0.0
      %1194 = vmatpush2.msra.mxu0 0.0
      %1195 = vmatprep.subr.mxu0 0.0
      %1196 = vmatpush2.msra.mxu0 0.0
      %1197 = vmatprep.subr.mxu0 0.0
      %1198 = vmatpush2.msra.mxu0 0.0
      %1199 = vmatprep.subr.mxu0 0.0
      %1200 = vmatpush2.msra.mxu0 0.0
      %1201 = vmatprep.subr.mxu0 0.0
      %1202 = vmatpush2.msra.mxu0 0.0
      %1203 = vmatprep.subr.mxu0 0.0
      %1204 = vmatpush2.msra.mxu0 0.0
      %1205 = vmatprep.subr.mxu0 0.0
      %1206 = vmatpush2.msra.mxu0 0.0
      %1207 = vmatprep.subr.mxu0 0.0
      %1208 = vmatpush2.msra.mxu0 0.0
      %1209 = vmatprep.subr.mxu0 0.0
      %1210 = vmatpush2.msra.mxu0 0.0
      %1211 = vmatprep.subr.mxu0 0.0
      %1212 = vmatpush2.msra.mxu0 0.0
      %1213 = vmatprep.subr.mxu0 0.0
      %1214 = vmatpush2.msra.mxu0 0.0
      %1215 = vmatprep.subr.mxu0 0.0
      %1216 = vmatpush2.msra.mxu0 0.0
      %1217 = vmatprep.mubr.f32.mxu0 0.0
      %1218 = vmatmul.mubr.f32.gmra.mxu0 %v1151
      %v1219 = vpop.f32.mrf.mxu0
      %v1220 = vadd.f32 0.0, %v1219
      %v1221 = vpop.f32.mrf.mxu0
      %1222 = vdwg.mxu0
      %1223 = vrot.lane.b32.xlu0 %v725, 104
      %v1224 = vpop.permute.xlu0 %1223
      %1225 = vrot.lane.b32.xlu0 %v725, 72
      %v1226 = vpop.permute.xlu0 %1225
      %v1227 = vsel %vm731, %v1224, 0
      %v1229 = vsel %vm731, %v1226, 0
      %1231 = vmatprep.subr.mxu0 0.0
      %1232 = vmatpush1.xpose.msra.mxu0 0.0
      %1233 = vmatprep.subr.mxu0 0.0
      %1234 = vmatpush1.xpose.msra.mxu0 0.0
      %1235 = vmatprep.subr.mxu0 0.0
      %1236 = vmatpush1.xpose.msra.mxu0 0.0
      %1237 = vmatprep.subr.mxu0 0.0
      %1238 = vmatpush1.xpose.msra.mxu0 0.0
      %1239 = vmatprep.subr.mxu0 0.0
      %1240 = vmatpush1.xpose.msra.mxu0 0.0
      %1241 = vmatprep.subr.mxu0 0.0
      %1242 = vmatpush1.xpose.msra.mxu0 0.0
      %1243 = vmatprep.subr.mxu0 0.0
      %1244 = vmatpush1.xpose.msra.mxu0 0.0
      %1245 = vmatprep.subr.mxu0 0.0
      %1246 = vmatpush1.xpose.msra.mxu0 0.0
      %1247 = vmatprep.subr.mxu0 0.0
      %1248 = vmatpush1.xpose.msra.mxu0 0.0
      %1249 = vmatprep.subr.mxu0 0.0
      %1250 = vmatpush1.xpose.msra.mxu0 0.0
      %1251 = vmatprep.subr.mxu0 0.0
      %1252 = vmatpush1.xpose.msra.mxu0 0.0
      %1253 = vmatprep.subr.mxu0 0.0
      %1254 = vmatpush1.xpose.msra.mxu0 0.0
      %1255 = vmatprep.subr.mxu0 0.0
      %1256 = vmatpush1.xpose.msra.mxu0 0.0
      %1257 = vmatprep.subr.mxu0 0.0
      %1258 = vmatpush1.xpose.msra.mxu0 0.0
      %1259 = vmatprep.subr.mxu0 0.0
      %1260 = vmatpush1.xpose.msra.mxu0 0.0
      %1261 = vmatprep.subr.mxu0 0.0
      %1262 = vmatpush1.xpose.msra.mxu0 %v1229
      %1263 = vmatprep.subr.mxu0 0.0
      %1264 = vmatpush2.xpose.msra.mxu0 0.0
      %1265 = vmatprep.subr.mxu0 0.0
      %1266 = vmatpush2.xpose.msra.mxu0 0.0
      %1267 = vmatprep.subr.mxu0 0.0
      %1268 = vmatpush2.xpose.msra.mxu0 0.0
      %1269 = vmatprep.subr.mxu0 0.0
      %1270 = vmatpush2.xpose.msra.mxu0 0.0
      %1271 = vmatprep.subr.mxu0 0.0
      %1272 = vmatpush2.xpose.msra.mxu0 0.0
      %1273 = vmatprep.subr.mxu0 0.0
      %1274 = vmatpush2.xpose.msra.mxu0 0.0
      %1275 = vmatprep.subr.mxu0 0.0
      %1276 = vmatpush2.xpose.msra.mxu0 0.0
      %1277 = vmatprep.subr.mxu0 0.0
      %1278 = vmatpush2.xpose.msra.mxu0 0.0
      %1279 = vmatprep.subr.mxu0 0.0
      %1280 = vmatpush2.xpose.msra.mxu0 0.0
      %1281 = vmatprep.subr.mxu0 0.0
      %1282 = vmatpush2.xpose.msra.mxu0 0.0
      %1283 = vmatprep.subr.mxu0 0.0
      %1284 = vmatpush2.xpose.msra.mxu0 0.0
      %1285 = vmatprep.subr.mxu0 0.0
      %1286 = vmatpush2.xpose.msra.mxu0 0.0
      %1287 = vmatprep.subr.mxu0 0.0
      %1288 = vmatpush2.xpose.msra.mxu0 0.0
      %1289 = vmatprep.subr.mxu0 0.0
      %1290 = vmatpush2.xpose.msra.mxu0 0.0
      %1291 = vmatprep.subr.mxu0 0.0
      %1292 = vmatpush2.xpose.msra.mxu0 0.0
      %1293 = vmatprep.subr.mxu0 0.0
      %1294 = vmatpush2.xpose.msra.mxu0 0.0
      %1295 = vmatprep.mubr.f32.mxu0 0.0
      %1296 = vmatmul.mubr.f32.gmra.mxu0 %v1227
      %v1297 = vpop.f32.mrf.mxu0
      %v1298 = vadd.f32 0.0, %v1297
      %v1299 = vpop.f32.mrf.mxu0
      %1300 = vdwg.mxu0
      %v1301 = vsel %vm731, %v1298, -inf
      %1302 = vmax.xlane.f32.xlu0 %v1301
      %v1303 = vpop.xlane.xlu0 %1302
      %v1304 = vsub.f32 %v1298, %v1303
      %v1305 = vmul.f32 %v1304, 1.442695
      %v1306 = vpow.pop %v1305
      %v1307 = vsel %vm731, %v1306, 0.0
      %1308 = vadd.xlane.f32.xlu0 %v1307
      %v1309 = vpop.xlane.xlu0 %1308
      %v1310 = vrcp.pop %v1309
      %v1311 = vmul.f32 %v1306, %v1310
      %1312 = vrot.lane.b32.xlu0 %v725, 40
      %v1313 = vpop.permute.xlu0 %1312
      %v1316 = vsel %vm731, %v1311, 0
      %1318 = vmatprep.subr.mxu0 0.0
      %1319 = vmatpush1.msra.mxu0 0.0
      %1320 = vmatprep.subr.mxu0 0.0
      %1321 = vmatpush1.msra.mxu0 0.0
      %1322 = vmatprep.subr.mxu0 0.0
      %1323 = vmatpush1.msra.mxu0 0.0
      %1324 = vmatprep.subr.mxu0 0.0
      %1325 = vmatpush1.msra.mxu0 0.0
      %1326 = vmatprep.subr.mxu0 0.0
      %1327 = vmatpush1.msra.mxu0 0.0
      %1328 = vmatprep.subr.mxu0 0.0
      %1329 = vmatpush1.msra.mxu0 0.0
      %1330 = vmatprep.subr.mxu0 0.0
      %1331 = vmatpush1.msra.mxu0 0.0
      %1332 = vmatprep.subr.mxu0 0.0
      %1333 = vmatpush1.msra.mxu0 0.0
      %1334 = vmatprep.subr.mxu0 0.0
      %1335 = vmatpush1.msra.mxu0 0.0
      %1336 = vmatprep.subr.mxu0 0.0
      %1337 = vmatpush1.msra.mxu0 0.0
      %1338 = vmatprep.subr.mxu0 0.0
      %1339 = vmatpush1.msra.mxu0 0.0
      %1340 = vmatprep.subr.mxu0 0.0
      %1341 = vmatpush1.msra.mxu0 0.0
      %1342 = vmatprep.subr.mxu0 0.0
      %1343 = vmatpush1.msra.mxu0 0.0
      %1344 = vmatprep.subr.mxu0 0.0
      %1345 = vmatpush1.msra.mxu0 0.0
      %1346 = vmatprep.subr.mxu0 0.0
      %1347 = vmatpush1.msra.mxu0 0.0
      %1348 = vmatprep.subr.mxu0 0.0
      %1349 = vmatpush1.msra.mxu0 %v1313
      %1350 = vmatprep.subr.mxu0 0.0
      %1351 = vmatpush2.msra.mxu0 0.0
      %1352 = vmatprep.subr.mxu0 0.0
      %1353 = vmatpush2.msra.mxu0 0.0
      %1354 = vmatprep.subr.mxu0 0.0
      %1355 = vmatpush2.msra.mxu0 0.0
      %1356 = vmatprep.subr.mxu0 0.0
      %1357 = vmatpush2.msra.mxu0 0.0
      %1358 = vmatprep.subr.mxu0 0.0
      %1359 = vmatpush2.msra.mxu0 0.0
      %1360 = vmatprep.subr.mxu0 0.0
      %1361 = vmatpush2.msra.mxu0 0.0
      %1362 = vmatprep.subr.mxu0 0.0
      %1363 = vmatpush2.msra.mxu0 0.0
      %1364 = vmatprep.subr.mxu0 0.0
      %1365 = vmatpush2.msra.mxu0 0.0
      %1366 = vmatprep.subr.mxu0 0.0
      %1367 = vmatpush2.msra.mxu0 0.0
      %1368 = vmatprep.subr.mxu0 0.0
      %1369 = vmatpush2.msra.mxu0 0.0
      %1370 = vmatprep.subr.mxu0 0.0
      %1371 = vmatpush2.msra.mxu0 0.0
      %1372 = vmatprep.subr.mxu0 0.0
      %1373 = vmatpush2.msra.mxu0 0.0
      %1374 = vmatprep.subr.mxu0 0.0
      %1375 = vmatpush2.msra.mxu0 0.0
      %1376 = vmatprep.subr.mxu0 0.0
      %1377 = vmatpush2.msra.mxu0 0.0
      %1378 = vmatprep.subr.mxu0 0.0
      %1379 = vmatpush2.msra.mxu0 0.0
      %1380 = vmatprep.subr.mxu0 0.0
      %1381 = vmatpush2.msra.mxu0 0.0
      %1382 = vmatprep.mubr.f32.mxu0 0.0
      %1383 = vmatmul.mubr.f32.gmra.mxu0 %v1316
      %v1384 = vpop.f32.mrf.mxu0
      %v1385 = vadd.f32 0.0, %v1384
      %v1386 = vpop.f32.mrf.mxu0
      %1387 = vdwg.mxu0
      %1389 = vrot.lane.b32.xlu0 %v1055, 8
      %v1390 = vpop.permute.xlu0 %1389
      %1393 = vrot.lane.b32.xlu0 %v1220, 16
      %v1394 = vpop.permute.xlu0 %1393
      %1397 = vrot.lane.b32.xlu0 %v1385, 24
      %v1398 = vpop.permute.xlu0 %1397
      %v1400 = vsel %vm731, %v890, %v1390
      %vm1401 = vcmask 130048
      %v1402 = vsel %vm1401, %v1400, %v1394
      %vm1403 = vcmask 195584
      %v1404 = vsel %vm1403, %v1402, %v1398
      %v1405 = vld [vmem:[%s585] sm:$0xff]
      %v1406 = vld [vmem:[%s585 + $0x8] sm:$0xff]
      %v1407 = vld [vmem:[%s585 + $0x10] sm:$0xff]
      %v1408 = vld [vmem:[%s585 + $0x18] sm:$0xff]
      %v1410 = vsel %vm622, %v1404, 0
      %1412 = vmatprep.subr.mxu0 0.0
      %1413 = vmatpush1.msra.mxu0 0.0
      %1414 = vmatprep.subr.mxu0 0.0
      %1415 = vmatpush1.msra.mxu0 0.0
      %1416 = vmatprep.subr.mxu0 0.0
      %1417 = vmatpush1.msra.mxu0 0.0
      %1418 = vmatprep.subr.mxu0 0.0
      %1419 = vmatpush1.msra.mxu0 0.0
      %1420 = vmatprep.subr.mxu0 0.0
      %1421 = vmatpush1.msra.mxu0 0.0
      %1422 = vmatprep.subr.mxu0 0.0
      %1423 = vmatpush1.msra.mxu0 0.0
      %1424 = vmatprep.subr.mxu0 0.0
      %1425 = vmatpush1.msra.mxu0 0.0
      %1426 = vmatprep.subr.mxu0 0.0
      %1427 = vmatpush1.msra.mxu0 0.0
      %1428 = vmatprep.subr.mxu0 0.0
      %1429 = vmatpush1.msra.mxu0 0.0
      %1430 = vmatprep.subr.mxu0 0.0
      %1431 = vmatpush1.msra.mxu0 0.0
      %1432 = vmatprep.subr.mxu0 0.0
      %1433 = vmatpush1.msra.mxu0 0.0
      %1434 = vmatprep.subr.mxu0 0.0
      %1435 = vmatpush1.msra.mxu0 0.0
      %1436 = vmatprep.subr.mxu0 0.0
      %1437 = vmatpush1.msra.mxu0 %v1408
      %1438 = vmatprep.subr.mxu0 0.0
      %1439 = vmatpush1.msra.mxu0 %v1407
      %1440 = vmatprep.subr.mxu0 0.0
      %1441 = vmatpush1.msra.mxu0 %v1406
      %1442 = vmatprep.subr.mxu0 0.0
      %1443 = vmatpush1.msra.mxu0 %v1405
      %1444 = vmatprep.subr.mxu0 0.0
      %1445 = vmatpush2.msra.mxu0 0.0
      %1446 = vmatprep.subr.mxu0 0.0
      %1447 = vmatpush2.msra.mxu0 0.0
      %1448 = vmatprep.subr.mxu0 0.0
      %1449 = vmatpush2.msra.mxu0 0.0
      %1450 = vmatprep.subr.mxu0 0.0
      %1451 = vmatpush2.msra.mxu0 0.0
      %1452 = vmatprep.subr.mxu0 0.0
      %1453 = vmatpush2.msra.mxu0 0.0
      %1454 = vmatprep.subr.mxu0 0.0
      %1455 = vmatpush2.msra.mxu0 0.0
      %1456 = vmatprep.subr.mxu0 0.0
      %1457 = vmatpush2.msra.mxu0 0.0
      %1458 = vmatprep.subr.mxu0 0.0
      %1459 = vmatpush2.msra.mxu0 0.0
      %1460 = vmatprep.subr.mxu0 0.0
      %1461 = vmatpush2.msra.mxu0 0.0
      %1462 = vmatprep.subr.mxu0 0.0
      %1463 = vmatpush2.msra.mxu0 0.0
      %1464 = vmatprep.subr.mxu0 0.0
      %1465 = vmatpush2.msra.mxu0 0.0
      %1466 = vmatprep.subr.mxu0 0.0
      %1467 = vmatpush2.msra.mxu0 0.0
      %1468 = vmatprep.subr.mxu0 0.0
      %1469 = vmatpush2.msra.mxu0 0.0
      %1470 = vmatprep.subr.mxu0 0.0
      %1471 = vmatpush2.msra.mxu0 0.0
      %1472 = vmatprep.subr.mxu0 0.0
      %1473 = vmatpush2.msra.mxu0 0.0
      %1474 = vmatprep.subr.mxu0 0.0
      %1475 = vmatpush2.msra.mxu0 0.0
      %1476 = vmatprep.mubr.f32.mxu0 0.0
      %1477 = vmatmul.mubr.f32.gmra.mxu0 %v1410
      %v1478 = vpop.f32.mrf.mxu0
      %v1479 = vadd.f32 0.0, %v1478
      %v1480 = vpop.f32.mrf.mxu0
      %1481 = vdwg.mxu0
      %v1482 = vld [vmem:[%s588] sm:$0x1]
      %v1483 = vld [vmem:[%s591] sm:$0x1]
      %v1484 = vsel %vm622, %v1479, 0.0
      %1485 = vadd.xlane.f32.xlu0 %v1484
      %v1486 = vpop.xlane.xlu0 %1485
      %v1487 = vmul.f32 %v1486, %v626
      %v1488 = vsub.f32 %v1479, %v1487
      %v1489 = vmul.f32 %v1488, %v1488
      %v1490 = vsel %vm622, %v1489, 0.0
      %1491 = vadd.xlane.f32.xlu0 %v1490
      %v1492 = vpop.xlane.xlu0 %1491
      %v1493 = vmul.f32 %v1492, %v626
      %v1494 = vadd.f32 %v1493, 1e-05
      %v1495 = vrsqrt.pop %v1494
      %v1496 = vmul.f32 %v1488, %v1495
      %v1498 = vlaneseq
      %v1499 = vshrl.u32 %v1498, 7
      %v1500 = vsub.s32 0, %v1499
      %v1501 = vrot.slane %v1482, %v1500
      %v1503 = vmul.f32 %v1496, %v1501
      %v1505 = vlaneseq
      %v1506 = vshrl.u32 %v1505, 7
      %v1507 = vsub.s32 0, %v1506
      %v1508 = vrot.slane %v1483, %v1507
      %v1510 = vadd.f32 %v1503, %v1508
      %v1511 = vld [vmem:[%s596] sm:$0xff]
      %v1512 = vld [vmem:[%s596 + $0x8] sm:$0xff]
      %v1513 = vld [vmem:[%s596 + $0x10] sm:$0xff]
      %v1514 = vld [vmem:[%s596 + $0x18] sm:$0xff]
      %v1515 = vld [vmem:[%s599] sm:$0x1]
      %v1517 = vlaneseq
      %v1518 = vshrl.u32 %v1517, 7
      %v1519 = vsub.s32 0, %v1518
      %v1520 = vrot.slane %v1515, %v1519
      %v1523 = vsel %vm622, %v1510, 0
      %1525 = vmatprep.subr.mxu0 0.0
      %1526 = vmatpush1.msra.mxu0 0.0
      %1527 = vmatprep.subr.mxu0 0.0
      %1528 = vmatpush1.msra.mxu0 0.0
      %1529 = vmatprep.subr.mxu0 0.0
      %1530 = vmatpush1.msra.mxu0 0.0
      %1531 = vmatprep.subr.mxu0 0.0
      %1532 = vmatpush1.msra.mxu0 0.0
      %1533 = vmatprep.subr.mxu0 0.0
      %1534 = vmatpush1.msra.mxu0 0.0
      %1535 = vmatprep.subr.mxu0 0.0
      %1536 = vmatpush1.msra.mxu0 0.0
      %1537 = vmatprep.subr.mxu0 0.0
      %1538 = vmatpush1.msra.mxu0 0.0
      %1539 = vmatprep.subr.mxu0 0.0
      %1540 = vmatpush1.msra.mxu0 0.0
      %1541 = vmatprep.subr.mxu0 0.0
      %1542 = vmatpush1.msra.mxu0 0.0
      %1543 = vmatprep.subr.mxu0 0.0
      %1544 = vmatpush1.msra.mxu0 0.0
      %1545 = vmatprep.subr.mxu0 0.0
      %1546 = vmatpush1.msra.mxu0 0.0
      %1547 = vmatprep.subr.mxu0 0.0
      %1548 = vmatpush1.msra.mxu0 0.0
      %1549 = vmatprep.subr.mxu0 0.0
      %1550 = vmatpush1.msra.mxu0 %v1514
      %1551 = vmatprep.subr.mxu0 0.0
      %1552 = vmatpush1.msra.mxu0 %v1513
      %1553 = vmatprep.subr.mxu0 0.0
      %1554 = vmatpush1.msra.mxu0 %v1512
      %1555 = vmatprep.subr.mxu0 0.0
      %1556 = vmatpush1.msra.mxu0 %v1511
      %1557 = vmatprep.subr.mxu0 0.0
      %1558 = vmatpush2.msra.mxu0 0.0
      %1559 = vmatprep.subr.mxu0 0.0
      %1560 = vmatpush2.msra.mxu0 0.0
      %1561 = vmatprep.subr.mxu0 0.0
      %1562 = vmatpush2.msra.mxu0 0.0
      %1563 = vmatprep.subr.mxu0 0.0
      %1564 = vmatpush2.msra.mxu0 0.0
      %1565 = vmatprep.subr.mxu0 0.0
      %1566 = vmatpush2.msra.mxu0 0.0
      %1567 = vmatprep.subr.mxu0 0.0
      %1568 = vmatpush2.msra.mxu0 0.0
      %1569 = vmatprep.subr.mxu0 0.0
      %1570 = vmatpush2.msra.mxu0 0.0
      %1571 = vmatprep.subr.mxu0 0.0
      %1572 = vmatpush2.msra.mxu0 0.0
      %1573 = vmatprep.subr.mxu0 0.0
      %1574 = vmatpush2.msra.mxu0 0.0
      %1575 = vmatprep.subr.mxu0 0.0
      %1576 = vmatpush2.msra.mxu0 0.0
      %1577 = vmatprep.subr.mxu0 0.0
      %1578 = vmatpush2.msra.mxu0 0.0
      %1579 = vmatprep.subr.mxu0 0.0
      %1580 = vmatpush2.msra.mxu0 0.0
      %1581 = vmatprep.subr.mxu0 0.0
      %1582 = vmatpush2.msra.mxu0 0.0
      %1583 = vmatprep.subr.mxu0 0.0
      %1584 = vmatpush2.msra.mxu0 0.0
      %1585 = vmatprep.subr.mxu0 0.0
      %1586 = vmatpush2.msra.mxu0 0.0
      %1587 = vmatprep.subr.mxu0 0.0
      %1588 = vmatpush2.msra.mxu0 0.0
      %1589 = vmatprep.mubr.f32.mxu0 0.0
      %1590 = vmatmul.mubr.f32.gmra.mxu0 %v1523
      %v1591 = vpop.f32.mrf.mxu0
      %v1592 = vadd.f32 %v1520, %v1591
      %v1593 = vpop.f32.mrf.mxu0
      %1594 = vdwg.mxu0
      %v1595 = vmul.f32 %v1592, 0.5
      %v1596 = vmul.f32 %v1592, 0.70710677
      %vm1597 = vcmp.lt.f32.partialorder %v1596, 0.0
      %v1598 = vsel %vm1597, -1.0, 1.0
      %v1599 = vand.u32 2147483647, %v1596
      %v1600 = vmul.f32 %v1599, 0.3275911
      %v1601 = vadd.f32 %v1600, 1.0
      %v1602 = vrcp.pop %v1601
      %v1603 = vmul.f32 1.0, %v1602
      %v1604 = vmul.f32 %v1603, 1.0614054
      %v1605 = vsub.f32 %v1604, 1.4531521
      %v1606 = vmul.f32 %v1605, %v1603
      %v1607 = vadd.f32 %v1606, 1.4214138
      %v1608 = vmul.f32 %v1607, %v1603
      %v1609 = vsub.f32 %v1608, 0.28449672
      %v1610 = vmul.f32 %v1609, %v1603
      %v1611 = vadd.f32 %v1610, 0.2548296
      %v1612 = vmul.f32 %v1611, %v1603
      %v1613 = vsub.f32 0.0, %v1599
      %v1614 = vmul.f32 %v1613, %v1599
      %v1615 = vmul.f32 %v1614, 1.442695
      %v1616 = vpow.pop %v1615
      %v1617 = vmul.f32 %v1612, %v1616
      %v1618 = vsub.f32 1.0, %v1617
      %v1619 = vmul.f32 %v1598, %v1618
      %v1620 = vadd.f32 %v1619, 1.0
      %v1621 = vmul.f32 %v1595, %v1620
      %v1622 = vld [vmem:[%s604] sm:$0xff]
      %v1623 = vld [vmem:[%s604 + $0x8] sm:$0xff]
      %v1624 = vld [vmem:[%s604 + $0x10] sm:$0xff]
      %v1625 = vld [vmem:[%s604 + $0x18] sm:$0xff]
      %v1626 = vld [vmem:[%s604 + $0x20] sm:$0xff]
      %v1627 = vld [vmem:[%s604 + $0x28] sm:$0xff]
      %v1628 = vld [vmem:[%s604 + $0x30] sm:$0xff]
      %v1629 = vld [vmem:[%s604 + $0x38] sm:$0xff]
      %v1630 = vld [vmem:[%s607] sm:$0x1]
      %v1632 = vlaneseq
      %v1633 = vshrl.u32 %v1632, 7
      %v1634 = vsub.s32 0, %v1633
      %v1635 = vrot.slane %v1630, %v1634
      %vm1637 = vcmask 523264
      %v1639 = vsel %vm1637, %v1621, 0
      %1641 = vmatprep.subr.mxu0 0.0
      %1642 = vmatpush1.msra.mxu0 0.0
      %1643 = vmatprep.subr.mxu0 0.0
      %1644 = vmatpush1.msra.mxu0 0.0
      %1645 = vmatprep.subr.mxu0 0.0
      %1646 = vmatpush1.msra.mxu0 0.0
      %1647 = vmatprep.subr.mxu0 0.0
      %1648 = vmatpush1.msra.mxu0 0.0
      %1649 = vmatprep.subr.mxu0 0.0
      %1650 = vmatpush1.msra.mxu0 0.0
      %1651 = vmatprep.subr.mxu0 0.0
      %1652 = vmatpush1.msra.mxu0 0.0
      %1653 = vmatprep.subr.mxu0 0.0
      %1654 = vmatpush1.msra.mxu0 0.0
      %1655 = vmatprep.subr.mxu0 0.0
      %1656 = vmatpush1.msra.mxu0 0.0
      %1657 = vmatprep.subr.mxu0 0.0
      %1658 = vmatpush1.msra.mxu0 %v1629
      %1659 = vmatprep.subr.mxu0 0.0
      %1660 = vmatpush1.msra.mxu0 %v1628
      %1661 = vmatprep.subr.mxu0 0.0
      %1662 = vmatpush1.msra.mxu0 %v1627
      %1663 = vmatprep.subr.mxu0 0.0
      %1664 = vmatpush1.msra.mxu0 %v1626
      %1665 = vmatprep.subr.mxu0 0.0
      %1666 = vmatpush1.msra.mxu0 %v1625
      %1667 = vmatprep.subr.mxu0 0.0
      %1668 = vmatpush1.msra.mxu0 %v1624
      %1669 = vmatprep.subr.mxu0 0.0
      %1670 = vmatpush1.msra.mxu0 %v1623
      %1671 = vmatprep.subr.mxu0 0.0
      %1672 = vmatpush1.msra.mxu0 %v1622
      %1673 = vmatprep.subr.mxu0 0.0
      %1674 = vmatpush2.msra.mxu0 0.0
      %1675 = vmatprep.subr.mxu0 0.0
      %1676 = vmatpush2.msra.mxu0 0.0
      %1677 = vmatprep.subr.mxu0 0.0
      %1678 = vmatpush2.msra.mxu0 0.0
      %1679 = vmatprep.subr.mxu0 0.0
      %1680 = vmatpush2.msra.mxu0 0.0
      %1681 = vmatprep.subr.mxu0 0.0
      %1682 = vmatpush2.msra.mxu0 0.0
      %1683 = vmatprep.subr.mxu0 0.0
      %1684 = vmatpush2.msra.mxu0 0.0
      %1685 = vmatprep.subr.mxu0 0.0
      %1686 = vmatpush2.msra.mxu0 0.0
      %1687 = vmatprep.subr.mxu0 0.0
      %1688 = vmatpush2.msra.mxu0 0.0
      %1689 = vmatprep.subr.mxu0 0.0
      %1690 = vmatpush2.msra.mxu0 0.0
      %1691 = vmatprep.subr.mxu0 0.0
      %1692 = vmatpush2.msra.mxu0 0.0
      %1693 = vmatprep.subr.mxu0 0.0
      %1694 = vmatpush2.msra.mxu0 0.0
      %1695 = vmatprep.subr.mxu0 0.0
      %1696 = vmatpush2.msra.mxu0 0.0
      %1697 = vmatprep.subr.mxu0 0.0
      %1698 = vmatpush2.msra.mxu0 0.0
      %1699 = vmatprep.subr.mxu0 0.0
      %1700 = vmatpush2.msra.mxu0 0.0
      %1701 = vmatprep.subr.mxu0 0.0
      %1702 = vmatpush2.msra.mxu0 0.0
      %1703 = vmatprep.subr.mxu0 0.0
      %1704 = vmatpush2.msra.mxu0 0.0
      %1705 = vmatprep.mubr.f32.mxu0 0.0
      %1706 = vmatmul.mubr.f32.gmra.mxu0 %v1639
      %v1707 = vpop.f32.mrf.mxu0
      %v1708 = vadd.f32 %v1635, %v1707
      %v1709 = vpop.f32.mrf.mxu0
      %1710 = vdwg.mxu0
      %v1711 = vadd.f32 %v1708, %v1479
      %1712 = vst.msk [vmem:[#allocation2] sm:$0xff] %vm622, %v1711
      %p1713 = scmp.eq.s32.totalorder %s29, 1
      // Predicated region
      $region77: #{transformer_forward.1} parent=71 // pred_check
        %p1714 = pneg %p1713
      $region78: #{transformer_forward.1} parent=71 // pred_check_branch
        %1716 = sbr.rel (%p1714) target = $region80
      $region79: #{transformer_forward.1} parent=71 // pred_region
        %v1717 = vld [vmem:[%s11] sm:$0x1]
        %v1718 = vld [vmem:[%s12] sm:$0x1]
        %v1719 = vsel %vm622, %v1711, 0.0
        %1720 = vadd.xlane.f32.xlu0 %v1719
        %v1721 = vpop.xlane.xlu0 %1720
        %v1722 = vmul.f32 %v1721, %v626
        %v1723 = vsub.f32 %v1711, %v1722
        %v1724 = vmul.f32 %v1723, %v1723
        %v1725 = vsel %vm622, %v1724, 0.0
        %1726 = vadd.xlane.f32.xlu0 %v1725
        %v1727 = vpop.xlane.xlu0 %1726
        %v1728 = vmul.f32 %v1727, %v626
        %v1729 = vadd.f32 %v1728, 1e-05
        %v1730 = vrsqrt.pop %v1729
        %v1731 = vmul.f32 %v1723, %v1730
        %v1733 = vlaneseq
        %v1734 = vshrl.u32 %v1733, 7
        %v1735 = vsub.s32 0, %v1734
        %v1736 = vrot.slane %v1717, %v1735
        %v1738 = vmul.f32 %v1731, %v1736
        %v1740 = vlaneseq
        %v1741 = vshrl.u32 %v1740, 7
        %v1742 = vsub.s32 0, %v1741
        %v1743 = vrot.slane %v1718, %v1742
        %v1745 = vadd.f32 %v1738, %v1743
        %1746 = vst.msk [vmem:[%s611] sm:$0xff] %vm622, %v1745
      $region80: #{transformer_forward.1} parent=71 // pred_fallthru
        _
      %p1747 = scmp.lt.s32.totalorder %s28, 1
      %s1748 = scalar_select %p1747, %s28, 1
      %s1749 = smul.addr %s1748, 8
      %s1750 = scalar_lea.vmem %s13, %s1749
      // Predicated region
      $region81: #{transformer_forward.1} parent=71 // pred_check
        %p1751 = pneg %p382
      $region82: #{transformer_forward.1} parent=71 // pred_check_branch
        %1753 = sbr.rel (%p1751) target = $region84
      $region83: #{transformer_forward.1} parent=71 // pred_region
        _
      $region84: #{transformer_forward.1} parent=71 // pred_fallthru
        _
    $region72: #{transformer_forward.1} parent=5 // pred_fallthru
      _
    %p1754 = scmp.le.s32.totalorder 2, %s19
    // Predicated region
    $region85: #{transformer_forward.1} parent=5 // pred_check
      %p1755 = pneg %p1754
    $region86: #{transformer_forward.1} parent=5 // pred_check_branch
      %1757 = sbr.rel (%p1755) target = $region88
    $region87: #{transformer_forward.1} parent=5 // pred_region
      %s1758 = ssub.s32 %s19, 2
      // Predicated region
      $region89: #{transformer_forward.1} parent=87 // pred_check
        %p1759 = pneg %p388
      $region90: #{transformer_forward.1} parent=87 // pred_check_branch
        %1761 = sbr.rel (%p1759) target = $region92
      $region91: #{transformer_forward.1} parent=87 // pred_region
        %p1762 = scmp.lt.s32.totalorder %s30, 1
        %s1763 = scalar_select %p1762, %s30, 1
        %s1764 = smul.addr %s1763, 8
        %s1765 = scalar_lea.vmem %s13, %s1764
      $region92: #{transformer_forward.1} parent=87 // pred_fallthru
        _
    $region88: #{transformer_forward.1} parent=5 // pred_fallthru
      _
  $region6: #{transformer_forward.1} parent=0 // loop_footer
    %s23 = sadd.s32 1, %s19
  $region7: #{transformer_forward.1} parent=0 // loop_footer_branch
    %18 = sbr.rel target = $region3
  $region8: #{transformer_forward.1} parent=0 // loop_exit
    _

</llo_original>
